<compile_context>
chip_gen: v6e
topology: v6e:2x2x1
jax: 0.10.0
libtpu: 0.0.40
codegen_flags: <defaults>
</compile_context>

<pallas_src>
import functools

import jax
import jax.numpy as jnp
import numpy as np
from jax.experimental import pallas as pl
from jax.experimental.pallas import tpu as pltpu

_LANE = 128


def _round_up(v, m):
    return ((v + m - 1) // m) * m


def _vmem_limit_bytes():
    """Generation-aware VMEM budget: ~75% of physical (96 MiB on v5e/v6e,
    48 MiB on v7x's 64 MiB/TC), conservative fallback if query fails."""
    cap = 64 << 20
    try:
        info = pltpu.get_tpu_info()
        cap = int(getattr(info, "vmem_capacity_bytes", cap))
    except Exception:
        pass
    return max(min(cap * 3 // 4, 100 << 20), 32 << 20)


def _choose_tm(n_round, fp, c_max, vmem_limit, resident_bytes):
    """Largest multiple-of-32 row tile whose double-buffered streamed slabs fit
    the VMEM budget; keeps >=2 grid steps when N allows (v7x megacore)."""
    budget = max(vmem_limit - resident_bytes - (4 << 20), 1 << 20)
    # per-row streamed bytes x2 buffers: int8 adj row + bf16 x slab + f32 out + inv
    per_row = 2 * (n_round * 1 + fp * 2 + c_max * 4 + 4)
    tm = min(budget // max(per_row, 1), 1024)
    tm = max((tm // 32) * 32, 32)
    if 2 * tm > n_round:
        tm = max(((n_round // 2) // 32) * 32, 32)
    return int(tm)


def _masked_log_softmax(z, valid):
    col = jax.lax.broadcasted_iota(jnp.int32, z.shape, 1)
    z = jnp.where(col < valid, z, -1e30)
    m = jnp.max(z, axis=-1, keepdims=True)
    s = z - m
    return s - jnp.log(jnp.sum(jnp.exp(s), axis=-1, keepdims=True))


# --------------------------------------------------------------------------
# Row-tiled per-layer kernel (large graphs): one SAGE layer over a row slab.
# --------------------------------------------------------------------------
def _sage_layer_kernel(adj_ref, inv_ref, xfull_ref, xslab_ref, wt_ref, wb_ref,
                       b_ref, out_ref, *, residual, out_valid):
    # mean-neighbor aggregation: int8 binary adj slab -> bf16 MXU, exact f32 1/deg scale
    agg = jnp.dot(adj_ref[...].astype(jnp.bfloat16), xfull_ref[...],
                  preferred_element_type=jnp.float32) * inv_ref[...]
    # two accumulating dots (no concat temp):
    #   z = agg @ [w_l | 0] + x @ [w_r | r_w] + [b_l | r_b]
    z = (jnp.dot(agg.astype(jnp.bfloat16), wt_ref[...],
                 preferred_element_type=jnp.float32)
         + jnp.dot(xslab_ref[...], wb_ref[...],
                   preferred_element_type=jnp.float32)
         + b_ref[...])
    if residual:
        h = z.shape[-1] // 2
        out_ref[...] = (jnp.maximum(z[:, :h], 0.0) + z[:, h:]).astype(out_ref.dtype)
    else:
        out_ref[...] = _masked_log_softmax(z, out_valid).astype(out_ref.dtype)


def _sage_layer(adj_i8, inv_deg, x_bf, wt, wb, b, *, tm, residual, out_dtype,
                vmem_limit, out_valid=0):
    Np = adj_i8.shape[0]
    F = x_bf.shape[1]
    C = wt.shape[1]
    c_out = C // 2 if residual else C

    kernel = functools.partial(_sage_layer_kernel, residual=residual,
                               out_valid=out_valid)

    flops = int(2 * Np * Np * F + 4 * Np * F * C)
    transcendentals = 0 if residual else int(Np * C)
    out_itemsize = jnp.dtype(out_dtype).itemsize
    bytes_accessed = int(Np * Np * 1 + 2 * Np * F * 2 + (wt.size + wb.size) * 2
                         + b.size * 4 + Np * 4 + Np * c_out * out_itemsize)

    return pl.pallas_call(
        kernel,
        out_shape=jax.ShapeDtypeStruct((Np, c_out), out_dtype),
        grid=(Np // tm,),
        in_specs=[
            pl.BlockSpec((tm, Np), lambda i: (i, 0)),   # int8 adj row slab (pipelined)
            pl.BlockSpec((tm, 1), lambda i: (i, 0)),    # f32 1/deg slab
            pl.BlockSpec((Np, F), lambda i: (0, 0)),    # full bf16 features, resident
            pl.BlockSpec((tm, F), lambda i: (i, 0)),    # bf16 self/residual row slab
            pl.BlockSpec((F, C), lambda i: (0, 0)),     # [w_l | 0]     (resident)
            pl.BlockSpec((F, C), lambda i: (0, 0)),     # [w_r | r_w]   (resident)
            pl.BlockSpec((1, C), lambda i: (0, 0)),     # [b_l | r_b]   (resident)
        ],
        out_specs=pl.BlockSpec((tm, c_out), lambda i: (i, 0)),
        compiler_params=pltpu.CompilerParams(
            dimension_semantics=("parallel",),
            vmem_limit_bytes=vmem_limit),
        cost_estimate=pl.CostEstimate(flops=flops,
                                      transcendentals=transcendentals,
                                      bytes_accessed=bytes_accessed),
    )(adj_i8, inv_deg, x_bf, x_bf, wt, wb, b)


# --------------------------------------------------------------------------
# Fully fused kernel (graph fits in VMEM): all 3 layers, adjacency read once.
# --------------------------------------------------------------------------
def _fused_kernel(adj_ref, inv_ref, x_ref, wt1_ref, wb1_ref, b1_ref,
                  wt2_ref, wb2_ref, b2_ref, wt3_ref, wb3_ref, b3_ref,
                  out_ref, *, hp, out_valid):
    adj = adj_ref[...].astype(jnp.bfloat16)
    inv = inv_ref[...]

    def sage(x_bf, wt, wb, b):
        agg = jnp.dot(adj, x_bf, preferred_element_type=jnp.float32) * inv
        return (jnp.dot(agg.astype(jnp.bfloat16), wt[...],
                        preferred_element_type=jnp.float32)
                + jnp.dot(x_bf, wb[...], preferred_element_type=jnp.float32)
                + b[...])

    z1 = sage(x_ref[...], wt1_ref, wb1_ref, b1_ref)
    x1 = (jnp.maximum(z1[:, :hp], 0.0) + z1[:, hp:]).astype(jnp.bfloat16)
    z2 = sage(x1, wt2_ref, wb2_ref, b2_ref)
    x2 = (jnp.maximum(z2[:, :hp], 0.0) + z2[:, hp:]).astype(jnp.bfloat16)
    z3 = sage(x2, wt3_ref, wb3_ref, b3_ref)
    out_ref[...] = _masked_log_softmax(z3, out_valid)


def _fused_forward(adj_i8, inv_deg, x0, prep, vmem_limit, out_valid):
    Np = adj_i8.shape[0]
    FP, HP, OP = prep["FP"], prep["HP"], prep["OP"]

    ins = [adj_i8, inv_deg, x0,
           prep["wt1"], prep["wb1"], prep["b1"],
           prep["wt2"], prep["wb2"], prep["b2"],
           prep["wt3"], prep["wb3"], prep["b3"]]

    flops = int(3 * 2 * Np * Np * max(FP, HP)
                + 4 * Np * FP * 2 * HP + 4 * Np * HP * 2 * HP + 4 * Np * HP * OP)
    bytes_accessed = int(Np * Np + Np * FP * 2 + Np * OP * 4
                         + sum(int(a.size) * a.dtype.itemsize for a in ins[3:]))

    kernel = functools.partial(_fused_kernel, hp=HP, out_valid=out_valid)
    return pl.pallas_call(
        kernel,
        out_shape=jax.ShapeDtypeStruct((Np, OP), jnp.float32),
        grid=(1,),
        in_specs=[pl.BlockSpec(a.shape, lambda i: (0, 0)) for a in ins],
        out_specs=pl.BlockSpec((Np, OP), lambda i: (0, 0)),
        compiler_params=pltpu.CompilerParams(
            dimension_semantics=("arbitrary",),
            vmem_limit_bytes=vmem_limit),
        cost_estimate=pl.CostEstimate(flops=flops,
                                      transcendentals=int(Np * OP),
                                      bytes_accessed=bytes_accessed),
    )(*ins)


# --------------------------------------------------------------------------
# Parameter prep: pad channels to 128 lanes, build blocked bf16 weights.
# --------------------------------------------------------------------------
def prepare_params(p, in_channels, hidden_channels, out_channels):
    FP = _round_up(in_channels, _LANE)
    HP = _round_up(hidden_channels, _LANE)
    OP = _round_up(out_channels, _LANE)

    def pad(a, r, c):
        return jnp.pad(a, ((0, r - a.shape[0]), (0, c - a.shape[1])))

    def top(wl, rin, rout):          # [w_l | 0]
        return jnp.concatenate(
            [pad(wl, rin, rout), jnp.zeros((rin, rout), jnp.float32)],
            axis=1).astype(jnp.bfloat16)

    def bot(wr, rw, rin, rout):      # [w_r | r_w]
        return jnp.concatenate([pad(wr, rin, rout), pad(rw, rin, rout)],
                               axis=1).astype(jnp.bfloat16)

    def bias2(bl, rb, rout):         # [b_l | r_b]  (kept f32)
        return jnp.concatenate([pad(bl, 1, rout), pad(rb, 1, rout)], axis=1)

    return {
        "FP": FP, "HP": HP, "OP": OP,
        "wt1": top(p["w1l"], FP, HP), "wb1": bot(p["w1r"], p["r1w"], FP, HP),
        "b1": bias2(p["b1l"], p["r1b"], HP),
        "wt2": top(p["w2l"], HP, HP), "wb2": bot(p["w2r"], p["r2w"], HP, HP),
        "b2": bias2(p["b2l"], p["r2b"], HP),
        "wt3": pad(p["w3l"], HP, OP).astype(jnp.bfloat16),
        "wb3": pad(p["w3r"], HP, OP).astype(jnp.bfloat16),
        "b3": pad(p["b3l"], 1, OP),
    }


def graphsage_forward(x, adj, params, hidden_channels, out_channels, *,
                      fuse=None, tm=None):
    """adj is the (binary) adjacency matrix; mean aggregation uses exact 1/deg."""
    N, F = x.shape
    prep = prepare_params(params, F, hidden_channels, out_channels)
    FP, HP, OP = prep["FP"], prep["HP"], prep["OP"]
    vmem_limit = _vmem_limit_bytes()

    adj = adj.astype(jnp.float32)
    deg = adj.sum(axis=1, keepdims=True)
    inv_deg = jnp.where(deg > 0, 1.0 / deg, 0.0).astype(jnp.float32)

    weight_keys = ("wt1", "wb1", "b1", "wt2", "wb2", "b2", "wt3", "wb3", "b3")
    weight_bytes = sum(int(prep[k].size) * prep[k].dtype.itemsize for k in weight_keys)

    if tm is None:
        n32 = _round_up(N, 32)
        resident = n32 * FP * 2 + weight_bytes
        tm = _choose_tm(n32, FP, max(2 * HP, OP), vmem_limit, resident)
    assert tm % 32 == 0, "row tile must be a multiple of 32 (int8 native sublane tile)"
    Np = _round_up(N, tm)

    # Pad nodes & lanes; binary adjacency stored as int8 (exact), activations bf16.
    adj_i8 = jnp.pad(adj, ((0, Np - N), (0, Np - N))).astype(jnp.int8)
    inv_deg = jnp.pad(inv_deg, ((0, Np - N), (0, 0)))
    x0 = jnp.pad(x.astype(jnp.bfloat16), ((0, Np - N), (0, FP - F)))

    if fuse is None:
        fused_est = Np * Np + 4 * Np * max(FP, 2 * HP) * 4 + weight_bytes
        fuse = fused_est < vmem_limit // 2 and Np <= 4096

    if fuse:
        logp = _fused_forward(adj_i8, inv_deg, x0, prep, vmem_limit, out_channels)
    else:
        x1 = _sage_layer(adj_i8, inv_deg, x0, prep["wt1"], prep["wb1"], prep["b1"],
                         tm=tm, residual=True, out_dtype=jnp.bfloat16,
                         vmem_limit=vmem_limit)
        x2 = _sage_layer(adj_i8, inv_deg, x1, prep["wt2"], prep["wb2"], prep["b2"],
                         tm=tm, residual=True, out_dtype=jnp.bfloat16,
                         vmem_limit=vmem_limit)
        logp = _sage_layer(adj_i8, inv_deg, x2, prep["wt3"], prep["wb3"], prep["b3"],
                           tm=tm, residual=False, out_dtype=jnp.float32,
                           vmem_limit=vmem_limit, out_valid=out_channels)
    return logp[:N, :out_channels]


# --------------------------------------------------------------------------
# Deterministic params + pure-JAX reference.
# --------------------------------------------------------------------------
def _linear_params(key, in_dim, out_dim, bias=True):
    """Weights stored already transposed as [in, out]."""
    kw, kb = jax.random.split(key)
    bound = 1.0 / np.sqrt(in_dim)
    w = jax.random.uniform(kw, (in_dim, out_dim), jnp.float32, -bound, bound)
    b = (jax.random.uniform(kb, (1, out_dim), jnp.float32, -bound, bound)
         if bias else None)
    return w, b


def make_params(in_channels, hidden_channels, out_channels, seed=0):
    keys = jax.random.split(jax.random.PRNGKey(seed), 8)
    p = {}
    p["w1l"], p["b1l"] = _linear_params(keys[0], in_channels, hidden_channels)
    p["w1r"], _ = _linear_params(keys[1], in_channels, hidden_channels, bias=False)
    p["w2l"], p["b2l"] = _linear_params(keys[2], hidden_channels, hidden_channels)
    p["w2r"], _ = _linear_params(keys[3], hidden_channels, hidden_channels, bias=False)
    p["w3l"], p["b3l"] = _linear_params(keys[4], hidden_channels, out_channels)
    p["w3r"], _ = _linear_params(keys[5], hidden_channels, out_channels, bias=False)
    p["r1w"], p["r1b"] = _linear_params(keys[6], in_channels, hidden_channels)
    p["r2w"], p["r2b"] = _linear_params(keys[7], hidden_channels, hidden_channels)
    return p


def reference_forward(x, adj_norm, p, *, matmul_dtype=jnp.float32):
    """Pure-JAX reference; matmul_dtype mirrors the kernel's operand precision."""
    def mm(a, b):
        return jnp.dot(a.astype(matmul_dtype), b.astype(matmul_dtype),
                       preferred_element_type=jnp.float32)

    def sage(xin, wl, bl, wr):
        return mm(mm(adj_norm, xin), wl) + bl + mm(xin, wr)

    h1 = jax.nn.relu(sage(x, p["w1l"], p["b1l"], p["w1r"]))
    x1 = h1 + (mm(x, p["r1w"]) + p["r1b"])
    h2 = jax.nn.relu(sage(x1, p["w2l"], p["b2l"], p["w2r"]))
    x2 = h2 + (mm(x1, p["r2w"]) + p["r2b"])
    x3 = sage(x2, p["w3l"], p["b3l"], p["w3r"])
    return jax.nn.log_softmax(x3, axis=-1)


if __name__ == "__main__":
    N = 64              # number of graph nodes
    in_channels = 16    # data.x.size(-1)
    hidden_channels = 8
    out_channels = 2    # nlabels

    key = jax.random.PRNGKey(0)
    kx, kadj = jax.random.split(key)

    # node features, standardized like the reference script: (x - mean) / std (unbiased)
    x = jax.random.normal(kx, (N, in_channels), jnp.float32)
    x = (x - x.mean(axis=0)) / x.std(axis=0, ddof=1)

    # random symmetric binary adjacency (no self loops)
    a = jax.random.bernoulli(kadj, 0.25, (N, N)).astype(jnp.float32)
    a = jnp.maximum(a, a.T) * (1.0 - jnp.eye(N, dtype=jnp.float32))
    deg = a.sum(axis=1, keepdims=True)
    adj_norm = a * jnp.where(deg > 0, 1.0 / deg, 0.0)   # for the pure-JAX reference

    params = make_params(in_channels, hidden_channels, out_channels, seed=0)

    # Fused path (graph fits in VMEM: adjacency read once, single pallas_call).
    out_fused = graphsage_forward(x, a, params, hidden_channels, out_channels, fuse=True)
    # Row-tiled path (auto tm=32 -> grid=(2,), exercises the pipelined layers).
    out_tiled = graphsage_forward(x, a, params, hidden_channels, out_channels, fuse=False)
    jax.block_until_ready((out_fused, out_tiled))

    # Both paths compute identical math (bf16 operands, exact 1/deg scale).
    np.testing.assert_allclose(np.asarray(out_fused), np.asarray(out_tiled),
                               rtol=1e-4, atol=1e-4)

    # Semantic check against the full-f32 reference (bf16 operand noise only).
    ref_f32 = reference_forward(x, adj_norm, params, matmul_dtype=jnp.float32)
    np.testing.assert_allclose(np.asarray(out_fused), np.asarray(ref_f32),
                               rtol=2e-2, atol=5e-2)
    np.testing.assert_allclose(np.asarray(out_tiled), np.asarray(ref_f32),
                               rtol=2e-2, atol=5e-2)

    print("KERNEL_OK")
</pallas_src>

<mosaic_0001>
module attributes {stable_mosaic.version = 11 : i64} {
  func.func @_fused_kernel(%arg0: i32, %arg1: memref<64x64xi8, #tpu.memory_space<vmem>>, %arg2: memref<64x1xf32, #tpu.memory_space<vmem>>, %arg3: memref<64x128xbf16, #tpu.memory_space<vmem>>, %arg4: memref<128x256xbf16, #tpu.memory_space<vmem>>, %arg5: memref<128x256xbf16, #tpu.memory_space<vmem>>, %arg6: memref<1x256xf32, #tpu.memory_space<vmem>>, %arg7: memref<128x256xbf16, #tpu.memory_space<vmem>>, %arg8: memref<128x256xbf16, #tpu.memory_space<vmem>>, %arg9: memref<1x256xf32, #tpu.memory_space<vmem>>, %arg10: memref<128x128xbf16, #tpu.memory_space<vmem>>, %arg11: memref<128x128xbf16, #tpu.memory_space<vmem>>, %arg12: memref<1x128xf32, #tpu.memory_space<vmem>>, %arg13: memref<64x128xf32, #tpu.memory_space<vmem>>) attributes {dimension_semantics = [#tpu.dimension_semantics<arbitrary>], iteration_bounds = array<i64: 1>, scalar_prefetch = 0 : i64, scratch_operands = 0 : i64, tpu.core_type = #tpu.core_type<tc>, window_params = [{pipeline_mode = #tpu.pipeline_mode<synchronous>, transform_indices = @transform_0, window_bounds = array<i64: 64, 64>}, {pipeline_mode = #tpu.pipeline_mode<synchronous>, transform_indices = @transform_1, window_bounds = array<i64: 64, 1>}, {pipeline_mode = #tpu.pipeline_mode<synchronous>, transform_indices = @transform_2, window_bounds = array<i64: 64, 128>}, {pipeline_mode = #tpu.pipeline_mode<synchronous>, transform_indices = @transform_3, window_bounds = array<i64: 128, 256>}, {pipeline_mode = #tpu.pipeline_mode<synchronous>, transform_indices = @transform_4, window_bounds = array<i64: 128, 256>}, {pipeline_mode = #tpu.pipeline_mode<synchronous>, transform_indices = @transform_5, window_bounds = array<i64: 1, 256>}, {pipeline_mode = #tpu.pipeline_mode<synchronous>, transform_indices = @transform_6, window_bounds = array<i64: 128, 256>}, {pipeline_mode = #tpu.pipeline_mode<synchronous>, transform_indices = @transform_7, window_bounds = array<i64: 128, 256>}, {pipeline_mode = #tpu.pipeline_mode<synchronous>, transform_indices = @transform_8, window_bounds = array<i64: 1, 256>}, {pipeline_mode = #tpu.pipeline_mode<synchronous>, transform_indices = @transform_9, window_bounds = array<i64: 128, 128>}, {pipeline_mode = #tpu.pipeline_mode<synchronous>, transform_indices = @transform_10, window_bounds = array<i64: 128, 128>}, {pipeline_mode = #tpu.pipeline_mode<synchronous>, transform_indices = @transform_11, window_bounds = array<i64: 1, 128>}, {pipeline_mode = #tpu.pipeline_mode<synchronous>, transform_indices = @transform_12, window_bounds = array<i64: 64, 128>}]} {
    %c0 = arith.constant 0 : index
    %c0_0 = arith.constant 0 : index
    %0 = vector.load %arg1[%c0, %c0_0] : memref<64x64xi8, #tpu.memory_space<vmem>>, vector<64x64xi8>
    %1 = arith.sitofp %0 : vector<64x64xi8> to vector<64x64xbf16>
    %c0_1 = arith.constant 0 : index
    %c0_2 = arith.constant 0 : index
    %2 = vector.load %arg2[%c0_1, %c0_2] : memref<64x1xf32, #tpu.memory_space<vmem>>, vector<64x1xf32>
    %c0_3 = arith.constant 0 : index
    %c0_4 = arith.constant 0 : index
    %3 = vector.load %arg3[%c0_3, %c0_4] : memref<64x128xbf16, #tpu.memory_space<vmem>>, vector<64x128xbf16>
    %cst = arith.constant dense<0.000000e+00> : vector<64x128xf32>
    %4 = tpu.matmul %1, %3, %cst {dimension_numbers = #tpu.dot_dimension_numbers<[1], [0], [0], [1], [0, 0, 1, 1], [], []>} : vector<64x64xbf16>, vector<64x128xbf16>, vector<64x128xf32> -> vector<64x128xf32>
    %5 = vector.broadcast %2 : vector<64x1xf32> to vector<64x128xf32>
    %6 = arith.mulf %4, %5 : vector<64x128xf32>
    %7 = arith.truncf %6 : vector<64x128xf32> to vector<64x128xbf16>
    %c0_5 = arith.constant 0 : index
    %c0_6 = arith.constant 0 : index
    %8 = vector.load %arg4[%c0_5, %c0_6] : memref<128x256xbf16, #tpu.memory_space<vmem>>, vector<128x256xbf16>
    %cst_7 = arith.constant dense<0.000000e+00> : vector<64x256xf32>
    %9 = tpu.matmul %7, %8, %cst_7 {dimension_numbers = #tpu.dot_dimension_numbers<[1], [0], [0], [1], [0, 0, 1, 1], [], []>} : vector<64x128xbf16>, vector<128x256xbf16>, vector<64x256xf32> -> vector<64x256xf32>
    %c0_8 = arith.constant 0 : index
    %c0_9 = arith.constant 0 : index
    %10 = vector.load %arg5[%c0_8, %c0_9] : memref<128x256xbf16, #tpu.memory_space<vmem>>, vector<128x256xbf16>
    %cst_10 = arith.constant dense<0.000000e+00> : vector<64x256xf32>
    %11 = tpu.matmul %3, %10, %cst_10 {dimension_numbers = #tpu.dot_dimension_numbers<[1], [0], [0], [1], [0, 0, 1, 1], [], []>} : vector<64x128xbf16>, vector<128x256xbf16>, vector<64x256xf32> -> vector<64x256xf32>
    %12 = arith.addf %9, %11 : vector<64x256xf32>
    %c0_11 = arith.constant 0 : index
    %c0_12 = arith.constant 0 : index
    %13 = vector.load %arg6[%c0_11, %c0_12] : memref<1x256xf32, #tpu.memory_space<vmem>>, vector<1x256xf32>
    %14 = vector.broadcast %13 : vector<1x256xf32> to vector<64x256xf32>
    %15 = arith.addf %12, %14 : vector<64x256xf32>
    %16 = vector.extract_strided_slice %15 {offsets = [0, 0], sizes = [64, 128], strides = [1, 1]} : vector<64x256xf32> to vector<64x128xf32>
    %cst_13 = arith.constant 0.000000e+00 : f32
    %17 = vector.broadcast %cst_13 : f32 to vector<64x128xf32>
    %18 = arith.maximumf %16, %17 : vector<64x128xf32>
    %19 = vector.extract_strided_slice %15 {offsets = [0, 128], sizes = [64, 128], strides = [1, 1]} : vector<64x256xf32> to vector<64x128xf32>
    %20 = arith.addf %18, %19 : vector<64x128xf32>
    %21 = arith.truncf %20 : vector<64x128xf32> to vector<64x128xbf16>
    %cst_14 = arith.constant dense<0.000000e+00> : vector<64x128xf32>
    %22 = tpu.matmul %1, %21, %cst_14 {dimension_numbers = #tpu.dot_dimension_numbers<[1], [0], [0], [1], [0, 0, 1, 1], [], []>} : vector<64x64xbf16>, vector<64x128xbf16>, vector<64x128xf32> -> vector<64x128xf32>
    %23 = vector.broadcast %2 : vector<64x1xf32> to vector<64x128xf32>
    %24 = arith.mulf %22, %23 : vector<64x128xf32>
    %25 = arith.truncf %24 : vector<64x128xf32> to vector<64x128xbf16>
    %c0_15 = arith.constant 0 : index
    %c0_16 = arith.constant 0 : index
    %26 = vector.load %arg7[%c0_15, %c0_16] : memref<128x256xbf16, #tpu.memory_space<vmem>>, vector<128x256xbf16>
    %cst_17 = arith.constant dense<0.000000e+00> : vector<64x256xf32>
    %27 = tpu.matmul %25, %26, %cst_17 {dimension_numbers = #tpu.dot_dimension_numbers<[1], [0], [0], [1], [0, 0, 1, 1], [], []>} : vector<64x128xbf16>, vector<128x256xbf16>, vector<64x256xf32> -> vector<64x256xf32>
    %c0_18 = arith.constant 0 : index
    %c0_19 = arith.constant 0 : index
    %28 = vector.load %arg8[%c0_18, %c0_19] : memref<128x256xbf16, #tpu.memory_space<vmem>>, vector<128x256xbf16>
    %cst_20 = arith.constant dense<0.000000e+00> : vector<64x256xf32>
    %29 = tpu.matmul %21, %28, %cst_20 {dimension_numbers = #tpu.dot_dimension_numbers<[1], [0], [0], [1], [0, 0, 1, 1], [], []>} : vector<64x128xbf16>, vector<128x256xbf16>, vector<64x256xf32> -> vector<64x256xf32>
    %30 = arith.addf %27, %29 : vector<64x256xf32>
    %c0_21 = arith.constant 0 : index
    %c0_22 = arith.constant 0 : index
    %31 = vector.load %arg9[%c0_21, %c0_22] : memref<1x256xf32, #tpu.memory_space<vmem>>, vector<1x256xf32>
    %32 = vector.broadcast %31 : vector<1x256xf32> to vector<64x256xf32>
    %33 = arith.addf %30, %32 : vector<64x256xf32>
    %34 = vector.extract_strided_slice %33 {offsets = [0, 0], sizes = [64, 128], strides = [1, 1]} : vector<64x256xf32> to vector<64x128xf32>
    %cst_23 = arith.constant 0.000000e+00 : f32
    %35 = vector.broadcast %cst_23 : f32 to vector<64x128xf32>
    %36 = arith.maximumf %34, %35 : vector<64x128xf32>
    %37 = vector.extract_strided_slice %33 {offsets = [0, 128], sizes = [64, 128], strides = [1, 1]} : vector<64x256xf32> to vector<64x128xf32>
    %38 = arith.addf %36, %37 : vector<64x128xf32>
    %39 = arith.truncf %38 : vector<64x128xf32> to vector<64x128xbf16>
    %cst_24 = arith.constant dense<0.000000e+00> : vector<64x128xf32>
    %40 = tpu.matmul %1, %39, %cst_24 {dimension_numbers = #tpu.dot_dimension_numbers<[1], [0], [0], [1], [0, 0, 1, 1], [], []>} : vector<64x64xbf16>, vector<64x128xbf16>, vector<64x128xf32> -> vector<64x128xf32>
    %41 = vector.broadcast %2 : vector<64x1xf32> to vector<64x128xf32>
    %42 = arith.mulf %40, %41 : vector<64x128xf32>
    %43 = arith.truncf %42 : vector<64x128xf32> to vector<64x128xbf16>
    %c0_25 = arith.constant 0 : index
    %c0_26 = arith.constant 0 : index
    %44 = vector.load %arg10[%c0_25, %c0_26] : memref<128x128xbf16, #tpu.memory_space<vmem>>, vector<128x128xbf16>
    %cst_27 = arith.constant dense<0.000000e+00> : vector<64x128xf32>
    %45 = tpu.matmul %43, %44, %cst_27 {dimension_numbers = #tpu.dot_dimension_numbers<[1], [0], [0], [1], [0, 0, 1, 1], [], []>} : vector<64x128xbf16>, vector<128x128xbf16>, vector<64x128xf32> -> vector<64x128xf32>
    %c0_28 = arith.constant 0 : index
    %c0_29 = arith.constant 0 : index
    %46 = vector.load %arg11[%c0_28, %c0_29] : memref<128x128xbf16, #tpu.memory_space<vmem>>, vector<128x128xbf16>
    %cst_30 = arith.constant dense<0.000000e+00> : vector<64x128xf32>
    %47 = tpu.matmul %39, %46, %cst_30 {dimension_numbers = #tpu.dot_dimension_numbers<[1], [0], [0], [1], [0, 0, 1, 1], [], []>} : vector<64x128xbf16>, vector<128x128xbf16>, vector<64x128xf32> -> vector<64x128xf32>
    %48 = arith.addf %45, %47 : vector<64x128xf32>
    %c0_31 = arith.constant 0 : index
    %c0_32 = arith.constant 0 : index
    %49 = vector.load %arg12[%c0_31, %c0_32] : memref<1x128xf32, #tpu.memory_space<vmem>>, vector<1x128xf32>
    %50 = vector.broadcast %49 : vector<1x128xf32> to vector<64x128xf32>
    %51 = arith.addf %48, %50 : vector<64x128xf32>
    %52 = tpu.iota {dimensions = array<i32: 1>} : vector<64x128xi32>
    %c2_i32 = arith.constant 2 : i32
    %53 = vector.broadcast %c2_i32 : i32 to vector<64x128xi32>
    %54 = arith.cmpi slt, %52, %53 : vector<64x128xi32>
    %cst_33 = arith.constant -1.000000e+30 : f32
    %55 = vector.broadcast %cst_33 : f32 to vector<64x128xf32>
    %56 = arith.select %54, %51, %55 : vector<64x128xi1>, vector<64x128xf32>
    %cst_34 = arith.constant dense<0xFF800000> : vector<64xf32>
    %57 = vector.multi_reduction <maximumf>, %56, %cst_34 [1] : vector<64x128xf32> to vector<64xf32>
    %58 = vector.shape_cast %57 : vector<64xf32> to vector<64x1xf32>
    %59 = vector.broadcast %58 : vector<64x1xf32> to vector<64x128xf32>
    %60 = arith.subf %56, %59 : vector<64x128xf32>
    %61 = math.exp %60 : vector<64x128xf32>
    %cst_35 = arith.constant dense<0.000000e+00> : vector<64xf32>
    %62 = vector.multi_reduction <add>, %61, %cst_35 [1] : vector<64x128xf32> to vector<64xf32>
    %63 = vector.shape_cast %62 : vector<64xf32> to vector<64x1xf32>
    %64 = math.log %63 : vector<64x1xf32>
    %65 = vector.broadcast %64 : vector<64x1xf32> to vector<64x128xf32>
    %66 = arith.subf %60, %65 : vector<64x128xf32>
    %c0_36 = arith.constant 0 : index
    %c0_37 = arith.constant 0 : index
    %67 = vector.load %arg13[%c0_36, %c0_37] : memref<64x128xf32, #tpu.memory_space<vmem>>, vector<64x128xf32>
    tpu.vector_store %arg13[%c0_36, %c0_37], %66 {strides = array<i32>} : memref<64x128xf32, #tpu.memory_space<vmem>>, vector<64x128xf32>,
    return
  }
  func.func @transform_0(%arg0: i32) -> (i32, i32) {
    %c0_i32 = arith.constant 0 : i32
    %c0_i32_0 = arith.constant 0 : i32
    %c0_i32_1 = arith.constant 0 : i32
    return %c0_i32, %c0_i32_0 : i32, i32
  }
  func.func @transform_1(%arg0: i32) -> (i32, i32) {
    %c0_i32 = arith.constant 0 : i32
    %c0_i32_0 = arith.constant 0 : i32
    %c0_i32_1 = arith.constant 0 : i32
    return %c0_i32, %c0_i32_0 : i32, i32
  }
  func.func @transform_2(%arg0: i32) -> (i32, i32) {
    %c0_i32 = arith.constant 0 : i32
    %c0_i32_0 = arith.constant 0 : i32
    %c0_i32_1 = arith.constant 0 : i32
    return %c0_i32, %c0_i32_0 : i32, i32
  }
  func.func @transform_3(%arg0: i32) -> (i32, i32) {
    %c0_i32 = arith.constant 0 : i32
    %c0_i32_0 = arith.constant 0 : i32
    %c0_i32_1 = arith.constant 0 : i32
    return %c0_i32, %c0_i32_0 : i32, i32
  }
  func.func @transform_4(%arg0: i32) -> (i32, i32) {
    %c0_i32 = arith.constant 0 : i32
    %c0_i32_0 = arith.constant 0 : i32
    %c0_i32_1 = arith.constant 0 : i32
    return %c0_i32, %c0_i32_0 : i32, i32
  }
  func.func @transform_5(%arg0: i32) -> (i32, i32) {
    %c0_i32 = arith.constant 0 : i32
    %c0_i32_0 = arith.constant 0 : i32
    %c0_i32_1 = arith.constant 0 : i32
    return %c0_i32, %c0_i32_0 : i32, i32
  }
  func.func @transform_6(%arg0: i32) -> (i32, i32) {
    %c0_i32 = arith.constant 0 : i32
    %c0_i32_0 = arith.constant 0 : i32
    %c0_i32_1 = arith.constant 0 : i32
    return %c0_i32, %c0_i32_0 : i32, i32
  }
  func.func @transform_7(%arg0: i32) -> (i32, i32) {
    %c0_i32 = arith.constant 0 : i32
    %c0_i32_0 = arith.constant 0 : i32
    %c0_i32_1 = arith.constant 0 : i32
    return %c0_i32, %c0_i32_0 : i32, i32
  }
  func.func @transform_8(%arg0: i32) -> (i32, i32) {
    %c0_i32 = arith.constant 0 : i32
    %c0_i32_0 = arith.constant 0 : i32
    %c0_i32_1 = arith.constant 0 : i32
    return %c0_i32, %c0_i32_0 : i32, i32
  }
  func.func @transform_9(%arg0: i32) -> (i32, i32) {
    %c0_i32 = arith.constant 0 : i32
    %c0_i32_0 = arith.constant 0 : i32
    %c0_i32_1 = arith.constant 0 : i32
    return %c0_i32, %c0_i32_0 : i32, i32
  }
  func.func @transform_10(%arg0: i32) -> (i32, i32) {
    %c0_i32 = arith.constant 0 : i32
    %c0_i32_0 = arith.constant 0 : i32
    %c0_i32_1 = arith.constant 0 : i32
    return %c0_i32, %c0_i32_0 : i32, i32
  }
  func.func @transform_11(%arg0: i32) -> (i32, i32) {
    %c0_i32 = arith.constant 0 : i32
    %c0_i32_0 = arith.constant 0 : i32
    %c0_i32_1 = arith.constant 0 : i32
    return %c0_i32, %c0_i32_0 : i32, i32
  }
  func.func @transform_12(%arg0: i32) -> (i32, i32) {
    %c0_i32 = arith.constant 0 : i32
    %c0_i32_0 = arith.constant 0 : i32
    %c0_i32_1 = arith.constant 0 : i32
    return %c0_i32, %c0_i32_0 : i32, i32
  }
}

</mosaic_0001>

<llo_original>
// kernel: tpu_custom_call.1
$region0: #{tpu_custom_call.1}
  #allocation0 [shape = 'u32[]', space=smem, size = 0x4, offset = 0x4, fixed_abs, tag = 'smem constant byte address 0x4 - core index']
  #allocation1 [shape = 'u32[144,128]{1,0:T(1,128)}', space=vmem, size = 0x12000, scoped, tag = 'internal scratch']
  %s0 = inlined_call_operand.vmem [shape: s8[64,64], index: 0, kind: input, shape index: {}]
  %s1 = inlined_call_operand.vmem [shape: f32[64,1], index: 1, kind: input, shape index: {}]
  %s2 = inlined_call_operand.hbm [shape: bf16[64,128], index: 2, kind: input, shape index: {}]
  %s3 = inlined_call_operand.hbm [shape: bf16[128,256], index: 3, kind: input, shape index: {}]
  %s4 = inlined_call_operand.hbm [shape: bf16[128,256], index: 4, kind: input, shape index: {}]
  %s5 = inlined_call_operand.hbm [shape: f32[1,256], index: 5, kind: input, shape index: {}]
  %s6 = inlined_call_operand.hbm [shape: bf16[128,256], index: 6, kind: input, shape index: {}]
  %s7 = inlined_call_operand.hbm [shape: bf16[128,256], index: 7, kind: input, shape index: {}]
  %s8 = inlined_call_operand.hbm [shape: f32[1,256], index: 8, kind: input, shape index: {}]
  %s9 = inlined_call_operand.vmem [shape: bf16[128,128], index: 9, kind: input, shape index: {}]
  %s10 = inlined_call_operand.hbm [shape: bf16[128,128], index: 10, kind: input, shape index: {}]
  %s11 = inlined_call_operand.vmem [shape: f32[1,128], index: 11, kind: input, shape index: {}]
  %s12 = inlined_call_operand.hbm [shape: f32[64,128], index: 12, kind: output, shape index: {}]
  %s13 = sld [smem:[#allocation0]]
  $region90: #{tpu_custom_call.1} parent=0
    _
  %s15 = ssub.s32 1, %s13
  %s16 = scalar_select 0, %s15, %s13
  $region1: #{tpu_custom_call.1} parent=0
    #allocation2 [shape = 'u8[16384]{0}', space=vmem, size = 0x4000, scoped, tag = 'input window, operand 2, single buffered']
    #allocation3 [shape = 's32[1]{0}', space=sflag, size = 0x4, scoped, tag = 'scoped memory for tpu_custom_call.1']
    #allocation4 [shape = 's32[1]{0}', space=sflag, size = 0x4, scoped, tag = 'scoped memory for tpu_custom_call.1']
    #allocation5 [shape = 'u8[65536]{0}', space=vmem, size = 0x10000, scoped, tag = 'input window, operand 3, single buffered']
    #allocation6 [shape = 's32[1]{0}', space=sflag, size = 0x4, scoped, tag = 'scoped memory for tpu_custom_call.1']
    #allocation7 [shape = 'u8[65536]{0}', space=vmem, size = 0x10000, scoped, tag = 'input window, operand 4, single buffered']
    #allocation8 [shape = 'u8[1024]{0}', space=vmem, size = 0x400, scoped, tag = 'input window, operand 5, single buffered']
    #allocation9 [shape = 's32[1]{0}', space=sflag, size = 0x4, scoped, tag = 'scoped memory for tpu_custom_call.1']
    #allocation10 [shape = 'u8[65536]{0}', space=vmem, size = 0x10000, scoped, tag = 'input window, operand 6, single buffered']
    #allocation11 [shape = 'u8[65536]{0}', space=vmem, size = 0x10000, scoped, tag = 'input window, operand 7, single buffered']
    #allocation12 [shape = 's32[1]{0}', space=sflag, size = 0x4, scoped, tag = 'scoped memory for tpu_custom_call.1']
    #allocation13 [shape = 'u8[1024]{0}', space=vmem, size = 0x400, scoped, tag = 'input window, operand 8, single buffered']
    #allocation14 [shape = 'u8[32768]{0}', space=vmem, size = 0x8000, scoped, tag = 'input window, operand 10, single buffered']
    #allocation15 [shape = 's32[1]{0}', space=sflag, size = 0x4, scoped, tag = 'scoped memory for tpu_custom_call.1']
    #allocation16 [shape = 'u8[32768]{0}', space=vmem, size = 0x8000, scoped, tag = 'output window, operand 0, single buffered']
    %17 = vsyncpa [#allocation3], 0
    %18 = vsyncpa [#allocation6], 0
    %19 = vsyncpa [#allocation9], 0
    %20 = vsyncpa [#allocation12], 0
    %21 = vsyncpa [#allocation15], 0
    %22 = vsyncpa [#allocation4], 0
    // Predicated region
    $region2: #{tpu_custom_call.1} parent=1 // pred_check
      _
    $region3: #{tpu_custom_call.1} parent=1 // pred_check_branch
      %24 = sbr.rel (0) target = $region5
    $region4: #{tpu_custom_call.1} parent=1 // pred_region
      _
    $region5: #{tpu_custom_call.1} parent=1 // pred_fallthru
      _
    // Predicated region
    $region6: #{tpu_custom_call.1} parent=1 // pred_check
      _
    $region7: #{tpu_custom_call.1} parent=1 // pred_check_branch
      %26 = sbr.rel (0) target = $region9
    $region8: #{tpu_custom_call.1} parent=1 // pred_region
      _
    $region9: #{tpu_custom_call.1} parent=1 // pred_fallthru
      _
    // Predicated region
    $region10: #{tpu_custom_call.1} parent=1 // pred_check
      _
    $region11: #{tpu_custom_call.1} parent=1 // pred_check_branch
      %28 = sbr.rel (0) target = $region13
    $region12: #{tpu_custom_call.1} parent=1 // pred_region
      %s30 = ssub.s32 512, 512
      %31 = vsyncadd [#allocation3], %s30
      %s32 = sshll.u32 [#allocation2], 4
      %s33 = int_to_ptr.vmem [resolvable:$true] %s32
      %38 = dma.hbm_to_vmem [thread:$0]  %s2, 512, %s33, [#allocation3], 64, 64, 4
    $region13: #{tpu_custom_call.1} parent=1 // pred_fallthru
      _
    // Predicated region
    $region14: #{tpu_custom_call.1} parent=1 // pred_check
      _
    $region15: #{tpu_custom_call.1} parent=1 // pred_check_branch
      %40 = sbr.rel (0) target = $region17
    $region16: #{tpu_custom_call.1} parent=1 // pred_region
      %s42 = ssub.s32 2048, 2048
      %43 = vsyncadd [#allocation6], %s42
      %s44 = sshll.u32 [#allocation5], 4
      %s45 = int_to_ptr.vmem [resolvable:$true] %s44
      %50 = dma.hbm_to_vmem [thread:$0]  %s3, 2048, %s45, [#allocation6], 128, 128, 8
    $region17: #{tpu_custom_call.1} parent=1 // pred_fallthru
      _
    // Predicated region
    $region18: #{tpu_custom_call.1} parent=1 // pred_check
      _
    $region19: #{tpu_custom_call.1} parent=1 // pred_check_branch
      %52 = sbr.rel (0) target = $region21
    $region20: #{tpu_custom_call.1} parent=1 // pred_region
      %s54 = ssub.s32 2048, 2048
      %55 = vsyncadd [#allocation6], %s54
      %s56 = sshll.u32 [#allocation7], 4
      %s57 = int_to_ptr.vmem [resolvable:$true] %s56
      %62 = dma.hbm_to_vmem [thread:$0]  %s4, 2048, %s57, [#allocation6], 128, 128, 8
    $region21: #{tpu_custom_call.1} parent=1 // pred_fallthru
      _
    // Predicated region
    $region22: #{tpu_custom_call.1} parent=1 // pred_check
      _
    $region23: #{tpu_custom_call.1} parent=1 // pred_check_branch
      %64 = sbr.rel (0) target = $region25
    $region24: #{tpu_custom_call.1} parent=1 // pred_region
      %s66 = ssub.s32 32, 32
      %67 = vsyncadd [#allocation9], %s66
      %s69 = sshll.u32 [#allocation8], 4
      %s70 = int_to_ptr.vmem [resolvable:$true] %s69
      %72 = dma.hbm_to_vmem [thread:$0]  %s5, 32, %s70, [#allocation9]
    $region25: #{tpu_custom_call.1} parent=1 // pred_fallthru
      _
    // Predicated region
    $region26: #{tpu_custom_call.1} parent=1 // pred_check
      _
    $region27: #{tpu_custom_call.1} parent=1 // pred_check_branch
      %74 = sbr.rel (0) target = $region29
    $region28: #{tpu_custom_call.1} parent=1 // pred_region
      %s76 = ssub.s32 2048, 2048
      %77 = vsyncadd [#allocation9], %s76
      %s78 = sshll.u32 [#allocation10], 4
      %s79 = int_to_ptr.vmem [resolvable:$true] %s78
      %84 = dma.hbm_to_vmem [thread:$0]  %s6, 2048, %s79, [#allocation9], 128, 128, 8
    $region29: #{tpu_custom_call.1} parent=1 // pred_fallthru
      _
    // Predicated region
    $region30: #{tpu_custom_call.1} parent=1 // pred_check
      _
    $region31: #{tpu_custom_call.1} parent=1 // pred_check_branch
      %86 = sbr.rel (0) target = $region33
    $region32: #{tpu_custom_call.1} parent=1 // pred_region
      %s88 = ssub.s32 2048, 2048
      %89 = vsyncadd [#allocation12], %s88
      %s90 = sshll.u32 [#allocation11], 4
      %s91 = int_to_ptr.vmem [resolvable:$true] %s90
      %96 = dma.hbm_to_vmem [thread:$0]  %s7, 2048, %s91, [#allocation12], 128, 128, 8
    $region33: #{tpu_custom_call.1} parent=1 // pred_fallthru
      _
    // Predicated region
    $region34: #{tpu_custom_call.1} parent=1 // pred_check
      _
    $region35: #{tpu_custom_call.1} parent=1 // pred_check_branch
      %98 = sbr.rel (0) target = $region37
    $region36: #{tpu_custom_call.1} parent=1 // pred_region
      %s100 = ssub.s32 32, 32
      %101 = vsyncadd [#allocation12], %s100
      %s103 = sshll.u32 [#allocation13], 4
      %s104 = int_to_ptr.vmem [resolvable:$true] %s103
      %106 = dma.hbm_to_vmem [thread:$0]  %s8, 32, %s104, [#allocation12]
    $region37: #{tpu_custom_call.1} parent=1 // pred_fallthru
      _
    // Predicated region
    $region38: #{tpu_custom_call.1} parent=1 // pred_check
      _
    $region39: #{tpu_custom_call.1} parent=1 // pred_check_branch
      %108 = sbr.rel (0) target = $region41
    $region40: #{tpu_custom_call.1} parent=1 // pred_region
      _
    $region41: #{tpu_custom_call.1} parent=1 // pred_fallthru
      _
    // Predicated region
    $region42: #{tpu_custom_call.1} parent=1 // pred_check
      _
    $region43: #{tpu_custom_call.1} parent=1 // pred_check_branch
      %110 = sbr.rel (0) target = $region45
    $region44: #{tpu_custom_call.1} parent=1 // pred_region
      %s112 = ssub.s32 1024, 1024
      %113 = vsyncadd [#allocation15], %s112
      %s114 = sshll.u32 [#allocation14], 4
      %s115 = int_to_ptr.vmem [resolvable:$true] %s114
      %120 = dma.hbm_to_vmem [thread:$0]  %s10, 1024, %s115, [#allocation15], 64, 64, 4
    $region45: #{tpu_custom_call.1} parent=1 // pred_fallthru
      _
    // Predicated region
    $region46: #{tpu_custom_call.1} parent=1 // pred_check
      _
    $region47: #{tpu_custom_call.1} parent=1 // pred_check_branch
      %122 = sbr.rel (0) target = $region49
    $region48: #{tpu_custom_call.1} parent=1 // pred_region
      _
    $region49: #{tpu_custom_call.1} parent=1 // pred_fallthru
      _
    // Predicated region
    $region50: #{tpu_custom_call.1} parent=1 // pred_check
      _
    $region51: #{tpu_custom_call.1} parent=1 // pred_check_branch
      %124 = sbr.rel (0) target = $region53
    $region52: #{tpu_custom_call.1} parent=1 // pred_region
      %125 = dma.done [#allocation3], 512
    $region53: #{tpu_custom_call.1} parent=1 // pred_fallthru
      _
    // Predicated region
    $region54: #{tpu_custom_call.1} parent=1 // pred_check
      _
    $region55: #{tpu_custom_call.1} parent=1 // pred_check_branch
      %127 = sbr.rel (0) target = $region57
    $region56: #{tpu_custom_call.1} parent=1 // pred_region
      %128 = dma.done [#allocation6], 2048
    $region57: #{tpu_custom_call.1} parent=1 // pred_fallthru
      _
    // Predicated region
    $region58: #{tpu_custom_call.1} parent=1 // pred_check
      _
    $region59: #{tpu_custom_call.1} parent=1 // pred_check_branch
      %130 = sbr.rel (0) target = $region61
    $region60: #{tpu_custom_call.1} parent=1 // pred_region
      %131 = dma.done [#allocation6], 2048
    $region61: #{tpu_custom_call.1} parent=1 // pred_fallthru
      _
    // Predicated region
    $region62: #{tpu_custom_call.1} parent=1 // pred_check
      _
    $region63: #{tpu_custom_call.1} parent=1 // pred_check_branch
      %133 = sbr.rel (0) target = $region65
    $region64: #{tpu_custom_call.1} parent=1 // pred_region
      %134 = dma.done [#allocation9], 32
    $region65: #{tpu_custom_call.1} parent=1 // pred_fallthru
      _
    // Predicated region
    $region66: #{tpu_custom_call.1} parent=1 // pred_check
      _
    $region67: #{tpu_custom_call.1} parent=1 // pred_check_branch
      %136 = sbr.rel (0) target = $region69
    $region68: #{tpu_custom_call.1} parent=1 // pred_region
      %137 = dma.done [#allocation9], 2048
    $region69: #{tpu_custom_call.1} parent=1 // pred_fallthru
      _
    // Predicated region
    $region70: #{tpu_custom_call.1} parent=1 // pred_check
      _
    $region71: #{tpu_custom_call.1} parent=1 // pred_check_branch
      %139 = sbr.rel (0) target = $region73
    $region72: #{tpu_custom_call.1} parent=1 // pred_region
      %140 = dma.done [#allocation12], 2048
    $region73: #{tpu_custom_call.1} parent=1 // pred_fallthru
      _
    // Predicated region
    $region74: #{tpu_custom_call.1} parent=1 // pred_check
      _
    $region75: #{tpu_custom_call.1} parent=1 // pred_check_branch
      %142 = sbr.rel (0) target = $region77
    $region76: #{tpu_custom_call.1} parent=1 // pred_region
      %143 = dma.done [#allocation12], 32
    $region77: #{tpu_custom_call.1} parent=1 // pred_fallthru
      _
    // Predicated region
    $region78: #{tpu_custom_call.1} parent=1 // pred_check
      _
    $region79: #{tpu_custom_call.1} parent=1 // pred_check_branch
      %145 = sbr.rel (0) target = $region81
    $region80: #{tpu_custom_call.1} parent=1 // pred_region
      %146 = dma.done [#allocation15], 1024
    $region81: #{tpu_custom_call.1} parent=1 // pred_fallthru
      _
    %v148 = vld [vmem:[%s0] sm:$0xff]
    %v149 = vld [vmem:[%s0 + $0x8] sm:$0xff]
    %v150 = vunpack.c.l.s8.bf16 %v148
    %v151 = vunpack.c.h.s8.bf16 %v148
    %v152 = vunpack.c.l.s8.bf16 %v149
    %v153 = vunpack.c.h.s8.bf16 %v149
    %v154 = vld [vmem:[%s1] sm:$0xff]
    %v155 = vld [vmem:[%s1 + $0x8] sm:$0xff]
    %v156 = vld [vmem:[%s1 + $0x10] sm:$0xff]
    %v157 = vld [vmem:[%s1 + $0x18] sm:$0xff]
    %v158 = vld [vmem:[%s1 + $0x20] sm:$0xff]
    %v159 = vld [vmem:[%s1 + $0x28] sm:$0xff]
    %v160 = vld [vmem:[%s1 + $0x30] sm:$0xff]
    %v161 = vld [vmem:[%s1 + $0x38] sm:$0xff]
    %v162 = vld [vmem:[#allocation2] sm:$0xf]
    %v163 = vld [vmem:[#allocation2 + $0x4] sm:$0xf]
    %v164 = vld [vmem:[#allocation2 + $0x8] sm:$0xf]
    %v165 = vld [vmem:[#allocation2 + $0xc] sm:$0xf]
    %v166 = vld [vmem:[#allocation2 + $0x10] sm:$0xf]
    %v167 = vld [vmem:[#allocation2 + $0x14] sm:$0xf]
    %v168 = vld [vmem:[#allocation2 + $0x18] sm:$0xf]
    %v169 = vld [vmem:[#allocation2 + $0x1c] sm:$0xf]
    %v178 = vunpack.c.l.b16 %v162
    %v179 = vunpack.c.l.b16 %v163
    %v180 = vunpack.c.l.b16 %v164
    %v181 = vunpack.c.l.b16 %v165
    %v182 = vunpack.c.l.b16 %v166
    %v183 = vunpack.c.l.b16 %v167
    %v184 = vunpack.c.l.b16 %v168
    %v185 = vunpack.c.l.b16 %v169
    %v186 = vpack.c.b16 %v179, %v178
    %v187 = vpack.c.b16 %v181, %v180
    %v188 = vpack.c.b16 %v183, %v182
    %v189 = vpack.c.b16 %v185, %v184
    %vm194 = vcmask 523264
    %v196 = vsel %vm194, %v150, 0
    %v199 = vsel %vm194, %v151, 0
    %v202 = vsel %vm194, %v152, 0
    %v205 = vsel %vm194, %v153, 0
    %207 = vmatprep.subr.bf16.mxu0 0
    %208 = vmatpush1.bf16.msra.mxu0 0
    %209 = vmatprep.subr.bf16.mxu0 0
    %210 = vmatpush1.bf16.msra.mxu0 0
    %211 = vmatprep.subr.bf16.mxu0 0
    %212 = vmatpush1.bf16.msra.mxu0 0
    %213 = vmatprep.subr.bf16.mxu0 0
    %214 = vmatpush1.bf16.msra.mxu0 0
    %215 = vmatprep.subr.bf16.mxu0 0
    %216 = vmatpush1.bf16.msra.mxu0 %v189
    %217 = vmatprep.subr.bf16.mxu0 0
    %218 = vmatpush1.bf16.msra.mxu0 %v188
    %219 = vmatprep.subr.bf16.mxu0 0
    %220 = vmatpush1.bf16.msra.mxu0 %v187
    %221 = vmatprep.subr.bf16.mxu0 0
    %222 = vmatpush1.bf16.msra.mxu0 %v186
    %223 = vmatprep.subr.bf16.mxu0 0
    %224 = vmatpush2.bf16.msra.mxu0 0
    %225 = vmatprep.subr.bf16.mxu0 0
    %226 = vmatpush2.bf16.msra.mxu0 0
    %227 = vmatprep.subr.bf16.mxu0 0
    %228 = vmatpush2.bf16.msra.mxu0 0
    %229 = vmatprep.subr.bf16.mxu0 0
    %230 = vmatpush2.bf16.msra.mxu0 0
    %231 = vmatprep.subr.bf16.mxu0 0
    %232 = vmatpush2.bf16.msra.mxu0 0
    %233 = vmatprep.subr.bf16.mxu0 0
    %234 = vmatpush2.bf16.msra.mxu0 0
    %235 = vmatprep.subr.bf16.mxu0 0
    %236 = vmatpush2.bf16.msra.mxu0 0
    %237 = vmatprep.subr.bf16.mxu0 0
    %238 = vmatpush2.bf16.msra.mxu0 0
    %239 = vmatprep.mubr.bf16.mxu0 0
    %240 = vmatmul.mubr.bf16.gmra.mxu0 %v196
    %v241 = vpop.f32.mrf.mxu0
    %v242 = vadd.f32 0.0, %v241
    %v243 = vpop.f32.mrf.mxu0
    %v244 = vpop.f32.mrf.mxu0
    %v245 = vadd.f32 0.0, %v244
    %v246 = vpop.f32.mrf.mxu0
    %247 = vmatprep.mubr.bf16.mxu0 0
    %248 = vmatmul.mubr.bf16.gmra.mxu0 %v199
    %v249 = vpop.f32.mrf.mxu0
    %v250 = vadd.f32 0.0, %v249
    %v251 = vpop.f32.mrf.mxu0
    %v252 = vpop.f32.mrf.mxu0
    %v253 = vadd.f32 0.0, %v252
    %v254 = vpop.f32.mrf.mxu0
    %255 = vmatprep.mubr.bf16.mxu0 0
    %256 = vmatmul.mubr.bf16.gmra.mxu0 %v202
    %v257 = vpop.f32.mrf.mxu0
    %v258 = vadd.f32 0.0, %v257
    %v259 = vpop.f32.mrf.mxu0
    %v260 = vpop.f32.mrf.mxu0
    %v261 = vadd.f32 0.0, %v260
    %v262 = vpop.f32.mrf.mxu0
    %263 = vmatprep.mubr.bf16.mxu0 0
    %264 = vmatmul.mubr.bf16.gmra.mxu0 %v205
    %v265 = vpop.f32.mrf.mxu0
    %v266 = vadd.f32 0.0, %v265
    %v267 = vpop.f32.mrf.mxu0
    %v268 = vpop.f32.mrf.mxu0
    %v269 = vadd.f32 0.0, %v268
    %v270 = vpop.f32.mrf.mxu0
    %271 = vdwg.mxu0
    %273 = vset.pattern.permute.xlu0 0
    %274 = vperm.xlu0 %273, %v154
    %v275 = vpop.permute.xlu0 %274
    %278 = vset.pattern.permute.xlu0 0
    %279 = vperm.xlu0 %278, %v155
    %v280 = vpop.permute.xlu0 %279
    %283 = vset.pattern.permute.xlu0 0
    %284 = vperm.xlu0 %283, %v156
    %v285 = vpop.permute.xlu0 %284
    %288 = vset.pattern.permute.xlu0 0
    %289 = vperm.xlu0 %288, %v157
    %v290 = vpop.permute.xlu0 %289
    %293 = vset.pattern.permute.xlu0 0
    %294 = vperm.xlu0 %293, %v158
    %v295 = vpop.permute.xlu0 %294
    %298 = vset.pattern.permute.xlu0 0
    %299 = vperm.xlu0 %298, %v159
    %v300 = vpop.permute.xlu0 %299
    %303 = vset.pattern.permute.xlu0 0
    %304 = vperm.xlu0 %303, %v160
    %v305 = vpop.permute.xlu0 %304
    %308 = vset.pattern.permute.xlu0 0
    %309 = vperm.xlu0 %308, %v161
    %v310 = vpop.permute.xlu0 %309
    %v312 = vmul.f32 %v242, %v275
    %v313 = vmul.f32 %v245, %v280
    %v314 = vmul.f32 %v250, %v285
    %v315 = vmul.f32 %v253, %v290
    %v316 = vmul.f32 %v258, %v295
    %v317 = vmul.f32 %v261, %v300
    %v318 = vmul.f32 %v266, %v305
    %v319 = vmul.f32 %v269, %v310
    %v320 = vpack.c.bf16 %v313, %v312
    %v321 = vpack.c.bf16 %v315, %v314
    %v322 = vpack.c.bf16 %v317, %v316
    %v323 = vpack.c.bf16 %v319, %v318
    %v324 = vld [vmem:[#allocation5] sm:$0xff]
    %v325 = vld [vmem:[#allocation5 + $0x8] sm:$0xff]
    %v326 = vld [vmem:[#allocation5 + $0x10] sm:$0xff]
    %v327 = vld [vmem:[#allocation5 + $0x18] sm:$0xff]
    %v328 = vld [vmem:[#allocation5 + $0x20] sm:$0xff]
    %v329 = vld [vmem:[#allocation5 + $0x28] sm:$0xff]
    %v330 = vld [vmem:[#allocation5 + $0x30] sm:$0xff]
    %v331 = vld [vmem:[#allocation5 + $0x38] sm:$0xff]
    %v332 = vld [vmem:[#allocation5 + $0x40] sm:$0xff]
    %v333 = vld [vmem:[#allocation5 + $0x48] sm:$0xff]
    %v334 = vld [vmem:[#allocation5 + $0x50] sm:$0xff]
    %v335 = vld [vmem:[#allocation5 + $0x58] sm:$0xff]
    %v336 = vld [vmem:[#allocation5 + $0x60] sm:$0xff]
    %v337 = vld [vmem:[#allocation5 + $0x68] sm:$0xff]
    %v338 = vld [vmem:[#allocation5 + $0x70] sm:$0xff]
    %v339 = vld [vmem:[#allocation5 + $0x78] sm:$0xff]
    %v340 = vld [vmem:[#allocation7] sm:$0xff]
    %v341 = vld [vmem:[#allocation7 + $0x8] sm:$0xff]
    %v342 = vld [vmem:[#allocation7 + $0x10] sm:$0xff]
    %v343 = vld [vmem:[#allocation7 + $0x18] sm:$0xff]
    %v344 = vld [vmem:[#allocation7 + $0x20] sm:$0xff]
    %v345 = vld [vmem:[#allocation7 + $0x28] sm:$0xff]
    %v346 = vld [vmem:[#allocation7 + $0x30] sm:$0xff]
    %v347 = vld [vmem:[#allocation7 + $0x38] sm:$0xff]
    %v348 = vld [vmem:[#allocation7 + $0x40] sm:$0xff]
    %v349 = vld [vmem:[#allocation7 + $0x48] sm:$0xff]
    %v350 = vld [vmem:[#allocation7 + $0x50] sm:$0xff]
    %v351 = vld [vmem:[#allocation7 + $0x58] sm:$0xff]
    %v352 = vld [vmem:[#allocation7 + $0x60] sm:$0xff]
    %v353 = vld [vmem:[#allocation7 + $0x68] sm:$0xff]
    %v354 = vld [vmem:[#allocation7 + $0x70] sm:$0xff]
    %v355 = vld [vmem:[#allocation7 + $0x78] sm:$0xff]
    %v372 = vunpack.c.l.b16 %v340
    %v373 = vunpack.c.h.b16 %v340
    %v374 = vunpack.c.l.b16 %v341
    %v375 = vunpack.c.h.b16 %v341
    %v376 = vunpack.c.l.b16 %v342
    %v377 = vunpack.c.h.b16 %v342
    %v378 = vunpack.c.l.b16 %v343
    %v379 = vunpack.c.h.b16 %v343
    %v380 = vunpack.c.l.b16 %v344
    %v381 = vunpack.c.h.b16 %v344
    %v382 = vunpack.c.l.b16 %v345
    %v383 = vunpack.c.h.b16 %v345
    %v384 = vunpack.c.l.b16 %v346
    %v385 = vunpack.c.h.b16 %v346
    %v386 = vunpack.c.l.b16 %v347
    %v387 = vunpack.c.h.b16 %v347
    %v388 = vunpack.c.l.b16 %v348
    %v389 = vunpack.c.h.b16 %v348
    %v390 = vunpack.c.l.b16 %v349
    %v391 = vunpack.c.h.b16 %v349
    %v392 = vunpack.c.l.b16 %v350
    %v393 = vunpack.c.h.b16 %v350
    %v394 = vunpack.c.l.b16 %v351
    %v395 = vunpack.c.h.b16 %v351
    %v396 = vunpack.c.l.b16 %v352
    %v397 = vunpack.c.h.b16 %v352
    %v398 = vunpack.c.l.b16 %v353
    %v399 = vunpack.c.h.b16 %v353
    %v400 = vunpack.c.l.b16 %v354
    %v401 = vunpack.c.h.b16 %v354
    %v402 = vunpack.c.l.b16 %v355
    %v403 = vunpack.c.h.b16 %v355
    %v404 = vpack.c.b16 %v374, %v372
    %v405 = vpack.c.b16 %v375, %v373
    %v406 = vpack.c.b16 %v378, %v376
    %v407 = vpack.c.b16 %v379, %v377
    %v408 = vpack.c.b16 %v382, %v380
    %v409 = vpack.c.b16 %v383, %v381
    %v410 = vpack.c.b16 %v386, %v384
    %v411 = vpack.c.b16 %v387, %v385
    %v412 = vpack.c.b16 %v390, %v388
    %v413 = vpack.c.b16 %v391, %v389
    %v414 = vpack.c.b16 %v394, %v392
    %v415 = vpack.c.b16 %v395, %v393
    %v416 = vpack.c.b16 %v398, %v396
    %v417 = vpack.c.b16 %v399, %v397
    %v418 = vpack.c.b16 %v402, %v400
    %v419 = vpack.c.b16 %v403, %v401
    %436 = vmatprep.subr.bf16.mxu0 %v419
    %437 = vmatpush1.bf16.msra.mxu0 %v418
    %438 = vmatprep.subr.bf16.mxu0 %v417
    %439 = vmatpush1.bf16.msra.mxu0 %v416
    %440 = vmatprep.subr.bf16.mxu0 %v415
    %441 = vmatpush1.bf16.msra.mxu0 %v414
    %442 = vmatprep.subr.bf16.mxu0 %v413
    %443 = vmatpush1.bf16.msra.mxu0 %v412
    %444 = vmatprep.subr.bf16.mxu0 %v411
    %445 = vmatpush1.bf16.msra.mxu0 %v410
    %446 = vmatprep.subr.bf16.mxu0 %v409
    %447 = vmatpush1.bf16.msra.mxu0 %v408
    %448 = vmatprep.subr.bf16.mxu0 %v407
    %449 = vmatpush1.bf16.msra.mxu0 %v406
    %450 = vmatprep.subr.bf16.mxu0 %v405
    %451 = vmatpush1.bf16.msra.mxu0 %v404
    %452 = vmatprep.subr.bf16.mxu0 0
    %453 = vmatpush2.bf16.msra.mxu0 0
    %454 = vmatprep.subr.bf16.mxu0 0
    %455 = vmatpush2.bf16.msra.mxu0 0
    %456 = vmatprep.subr.bf16.mxu0 0
    %457 = vmatpush2.bf16.msra.mxu0 0
    %458 = vmatprep.subr.bf16.mxu0 0
    %459 = vmatpush2.bf16.msra.mxu0 0
    %460 = vmatprep.subr.bf16.mxu0 0
    %461 = vmatpush2.bf16.msra.mxu0 0
    %462 = vmatprep.subr.bf16.mxu0 0
    %463 = vmatpush2.bf16.msra.mxu0 0
    %464 = vmatprep.subr.bf16.mxu0 0
    %465 = vmatpush2.bf16.msra.mxu0 0
    %466 = vmatprep.subr.bf16.mxu0 0
    %467 = vmatpush2.bf16.msra.mxu0 0
    %468 = vmatprep.mubr.bf16.mxu0 0
    %469 = vmatmul.mubr.bf16.gmra.mxu0 %v186
    %v470 = vpop.f32.mrf.mxu0
    %v471 = vadd.f32 0.0, %v470
    %v472 = vpop.f32.mrf.mxu0
    %v473 = vadd.f32 0.0, %v472
    %v474 = vpop.f32.mrf.mxu0
    %v475 = vadd.f32 0.0, %v474
    %v476 = vpop.f32.mrf.mxu0
    %v477 = vadd.f32 0.0, %v476
    %478 = vmatprep.mubr.bf16.mxu0 0
    %479 = vmatmul.mubr.bf16.gmra.mxu0 %v187
    %v480 = vpop.f32.mrf.mxu0
    %v481 = vadd.f32 0.0, %v480
    %v482 = vpop.f32.mrf.mxu0
    %v483 = vadd.f32 0.0, %v482
    %v484 = vpop.f32.mrf.mxu0
    %v485 = vadd.f32 0.0, %v484
    %v486 = vpop.f32.mrf.mxu0
    %v487 = vadd.f32 0.0, %v486
    %488 = vmatprep.mubr.bf16.mxu0 0
    %489 = vmatmul.mubr.bf16.gmra.mxu0 %v188
    %v490 = vpop.f32.mrf.mxu0
    %v491 = vadd.f32 0.0, %v490
    %v492 = vpop.f32.mrf.mxu0
    %v493 = vadd.f32 0.0, %v492
    %v494 = vpop.f32.mrf.mxu0
    %v495 = vadd.f32 0.0, %v494
    %v496 = vpop.f32.mrf.mxu0
    %v497 = vadd.f32 0.0, %v496
    %498 = vmatprep.mubr.bf16.mxu0 0
    %499 = vmatmul.mubr.bf16.gmra.mxu0 %v189
    %v500 = vpop.f32.mrf.mxu0
    %v501 = vadd.f32 0.0, %v500
    %v502 = vpop.f32.mrf.mxu0
    %v503 = vadd.f32 0.0, %v502
    %v504 = vpop.f32.mrf.mxu0
    %v505 = vadd.f32 0.0, %v504
    %v506 = vpop.f32.mrf.mxu0
    %v507 = vadd.f32 0.0, %v506
    %508 = vdwg.mxu0
    %v525 = vunpack.c.l.b16 %v324
    %v526 = vunpack.c.h.b16 %v324
    %v527 = vunpack.c.l.b16 %v325
    %v528 = vunpack.c.h.b16 %v325
    %v529 = vunpack.c.l.b16 %v326
    %v530 = vunpack.c.h.b16 %v326
    %v531 = vunpack.c.l.b16 %v327
    %v532 = vunpack.c.h.b16 %v327
    %v533 = vunpack.c.l.b16 %v328
    %v534 = vunpack.c.h.b16 %v328
    %v535 = vunpack.c.l.b16 %v329
    %v536 = vunpack.c.h.b16 %v329
    %v537 = vunpack.c.l.b16 %v330
    %v538 = vunpack.c.h.b16 %v330
    %v539 = vunpack.c.l.b16 %v331
    %v540 = vunpack.c.h.b16 %v331
    %v541 = vunpack.c.l.b16 %v332
    %v542 = vunpack.c.h.b16 %v332
    %v543 = vunpack.c.l.b16 %v333
    %v544 = vunpack.c.h.b16 %v333
    %v545 = vunpack.c.l.b16 %v334
    %v546 = vunpack.c.h.b16 %v334
    %v547 = vunpack.c.l.b16 %v335
    %v548 = vunpack.c.h.b16 %v335
    %v549 = vunpack.c.l.b16 %v336
    %v550 = vunpack.c.h.b16 %v336
    %v551 = vunpack.c.l.b16 %v337
    %v552 = vunpack.c.h.b16 %v337
    %v553 = vunpack.c.l.b16 %v338
    %v554 = vunpack.c.h.b16 %v338
    %v555 = vunpack.c.l.b16 %v339
    %v556 = vunpack.c.h.b16 %v339
    %v557 = vpack.c.b16 %v527, %v525
    %v558 = vpack.c.b16 %v528, %v526
    %v559 = vpack.c.b16 %v531, %v529
    %v560 = vpack.c.b16 %v532, %v530
    %v561 = vpack.c.b16 %v535, %v533
    %v562 = vpack.c.b16 %v536, %v534
    %v563 = vpack.c.b16 %v539, %v537
    %v564 = vpack.c.b16 %v540, %v538
    %v565 = vpack.c.b16 %v543, %v541
    %v566 = vpack.c.b16 %v544, %v542
    %v567 = vpack.c.b16 %v547, %v545
    %v568 = vpack.c.b16 %v548, %v546
    %v569 = vpack.c.b16 %v551, %v549
    %v570 = vpack.c.b16 %v552, %v550
    %v571 = vpack.c.b16 %v555, %v553
    %v572 = vpack.c.b16 %v556, %v554
    %589 = vmatprep.subr.bf16.mxu0 %v572
    %590 = vmatpush1.bf16.msra.mxu0 %v571
    %591 = vmatprep.subr.bf16.mxu0 %v570
    %592 = vmatpush1.bf16.msra.mxu0 %v569
    %593 = vmatprep.subr.bf16.mxu0 %v568
    %594 = vmatpush1.bf16.msra.mxu0 %v567
    %595 = vmatprep.subr.bf16.mxu0 %v566
    %596 = vmatpush1.bf16.msra.mxu0 %v565
    %597 = vmatprep.subr.bf16.mxu0 %v564
    %598 = vmatpush1.bf16.msra.mxu0 %v563
    %599 = vmatprep.subr.bf16.mxu0 %v562
    %600 = vmatpush1.bf16.msra.mxu0 %v561
    %601 = vmatprep.subr.bf16.mxu0 %v560
    %602 = vmatpush1.bf16.msra.mxu0 %v559
    %603 = vmatprep.subr.bf16.mxu0 %v558
    %604 = vmatpush1.bf16.msra.mxu0 %v557
    %605 = vmatprep.subr.bf16.mxu0 0
    %606 = vmatpush2.bf16.msra.mxu0 0
    %607 = vmatprep.subr.bf16.mxu0 0
    %608 = vmatpush2.bf16.msra.mxu0 0
    %609 = vmatprep.subr.bf16.mxu0 0
    %610 = vmatpush2.bf16.msra.mxu0 0
    %611 = vmatprep.subr.bf16.mxu0 0
    %612 = vmatpush2.bf16.msra.mxu0 0
    %613 = vmatprep.subr.bf16.mxu0 0
    %614 = vmatpush2.bf16.msra.mxu0 0
    %615 = vmatprep.subr.bf16.mxu0 0
    %616 = vmatpush2.bf16.msra.mxu0 0
    %617 = vmatprep.subr.bf16.mxu0 0
    %618 = vmatpush2.bf16.msra.mxu0 0
    %619 = vmatprep.subr.bf16.mxu0 0
    %620 = vmatpush2.bf16.msra.mxu0 0
    %621 = vmatprep.mubr.bf16.mxu0 0
    %622 = vmatmul.mubr.bf16.gmra.mxu0 %v320
    %v623 = vpop.f32.mrf.mxu0
    %v624 = vadd.f32 %v471, %v623
    %v625 = vpop.f32.mrf.mxu0
    %v626 = vadd.f32 %v473, %v625
    %v627 = vpop.f32.mrf.mxu0
    %v628 = vadd.f32 %v475, %v627
    %v629 = vpop.f32.mrf.mxu0
    %v630 = vadd.f32 %v477, %v629
    %631 = vmatprep.mubr.bf16.mxu0 0
    %632 = vmatmul.mubr.bf16.gmra.mxu0 %v321
    %v633 = vpop.f32.mrf.mxu0
    %v634 = vadd.f32 %v481, %v633
    %v635 = vpop.f32.mrf.mxu0
    %v636 = vadd.f32 %v483, %v635
    %v637 = vpop.f32.mrf.mxu0
    %v638 = vadd.f32 %v485, %v637
    %v639 = vpop.f32.mrf.mxu0
    %v640 = vadd.f32 %v487, %v639
    %641 = vmatprep.mubr.bf16.mxu0 0
    %642 = vmatmul.mubr.bf16.gmra.mxu0 %v322
    %v643 = vpop.f32.mrf.mxu0
    %v644 = vadd.f32 %v491, %v643
    %v645 = vpop.f32.mrf.mxu0
    %v646 = vadd.f32 %v493, %v645
    %v647 = vpop.f32.mrf.mxu0
    %v648 = vadd.f32 %v495, %v647
    %v649 = vpop.f32.mrf.mxu0
    %v650 = vadd.f32 %v497, %v649
    %651 = vmatprep.mubr.bf16.mxu0 0
    %652 = vmatmul.mubr.bf16.gmra.mxu0 %v323
    %v653 = vpop.f32.mrf.mxu0
    %v654 = vadd.f32 %v501, %v653
    %v655 = vpop.f32.mrf.mxu0
    %v656 = vadd.f32 %v503, %v655
    %v657 = vpop.f32.mrf.mxu0
    %v658 = vadd.f32 %v505, %v657
    %v659 = vpop.f32.mrf.mxu0
    %v660 = vadd.f32 %v507, %v659
    %661 = vdwg.mxu0
    %v662 = vld [vmem:[#allocation8] sm:$0x3]
    %v664 = vlaneseq
    %v665 = vshrl.u32 %v664, 7
    %v666 = vsub.s32 0, %v665
    %v667 = vrot.slane %v662, %v666
    %v668 = vlaneseq
    %v669 = vshrl.u32 %v668, 7
    %v670 = vsub.s32 1, %v669
    %v671 = vrot.slane %v662, %v670
    %v674 = vadd.f32 %v624, %v667
    %v675 = vadd.f32 %v626, %v671
    %v676 = vadd.f32 %v628, %v667
    %v677 = vadd.f32 %v630, %v671
    %v678 = vadd.f32 %v634, %v667
    %v679 = vadd.f32 %v636, %v671
    %v680 = vadd.f32 %v638, %v667
    %v681 = vadd.f32 %v640, %v671
    %v682 = vadd.f32 %v644, %v667
    %v683 = vadd.f32 %v646, %v671
    %v684 = vadd.f32 %v648, %v667
    %v685 = vadd.f32 %v650, %v671
    %v686 = vadd.f32 %v654, %v667
    %v687 = vadd.f32 %v656, %v671
    %v688 = vadd.f32 %v658, %v667
    %v689 = vadd.f32 %v660, %v671
    %v690 = vmax.f32 %v674, 0.0
    %v691 = vmax.f32 %v676, 0.0
    %v692 = vmax.f32 %v678, 0.0
    %v693 = vmax.f32 %v680, 0.0
    %v694 = vmax.f32 %v682, 0.0
    %v695 = vmax.f32 %v684, 0.0
    %v696 = vmax.f32 %v686, 0.0
    %v697 = vmax.f32 %v688, 0.0
    %v698 = vadd.f32 %v690, %v675
    %v699 = vadd.f32 %v691, %v677
    %v700 = vadd.f32 %v692, %v679
    %v701 = vadd.f32 %v693, %v681
    %v702 = vadd.f32 %v694, %v683
    %v703 = vadd.f32 %v695, %v685
    %v704 = vadd.f32 %v696, %v687
    %v705 = vadd.f32 %v697, %v689
    %v706 = vpack.c.bf16 %v699, %v698
    %v707 = vpack.c.bf16 %v701, %v700
    %v708 = vpack.c.bf16 %v703, %v702
    %v709 = vpack.c.bf16 %v705, %v704
    %710 = vmatprep.subr.bf16.mxu0 0
    %711 = vmatpush1.bf16.msra.mxu0 0
    %712 = vmatprep.subr.bf16.mxu0 0
    %713 = vmatpush1.bf16.msra.mxu0 0
    %714 = vmatprep.subr.bf16.mxu0 0
    %715 = vmatpush1.bf16.msra.mxu0 0
    %716 = vmatprep.subr.bf16.mxu0 0
    %717 = vmatpush1.bf16.msra.mxu0 0
    %718 = vmatprep.subr.bf16.mxu0 0
    %719 = vmatpush1.bf16.msra.mxu0 %v709
    %720 = vmatprep.subr.bf16.mxu0 0
    %721 = vmatpush1.bf16.msra.mxu0 %v708
    %722 = vmatprep.subr.bf16.mxu0 0
    %723 = vmatpush1.bf16.msra.mxu0 %v707
    %724 = vmatprep.subr.bf16.mxu0 0
    %725 = vmatpush1.bf16.msra.mxu0 %v706
    %726 = vmatprep.subr.bf16.mxu0 0
    %727 = vmatpush2.bf16.msra.mxu0 0
    %728 = vmatprep.subr.bf16.mxu0 0
    %729 = vmatpush2.bf16.msra.mxu0 0
    %730 = vmatprep.subr.bf16.mxu0 0
    %731 = vmatpush2.bf16.msra.mxu0 0
    %732 = vmatprep.subr.bf16.mxu0 0
    %733 = vmatpush2.bf16.msra.mxu0 0
    %734 = vmatprep.subr.bf16.mxu0 0
    %735 = vmatpush2.bf16.msra.mxu0 0
    %736 = vmatprep.subr.bf16.mxu0 0
    %737 = vmatpush2.bf16.msra.mxu0 0
    %738 = vmatprep.subr.bf16.mxu0 0
    %739 = vmatpush2.bf16.msra.mxu0 0
    %740 = vmatprep.subr.bf16.mxu0 0
    %741 = vmatpush2.bf16.msra.mxu0 0
    %742 = vmatprep.mubr.bf16.mxu0 0
    %743 = vmatmul.mubr.bf16.gmra.mxu0 %v196
    %v744 = vpop.f32.mrf.mxu0
    %v745 = vadd.f32 0.0, %v744
    %v746 = vpop.f32.mrf.mxu0
    %v747 = vpop.f32.mrf.mxu0
    %v748 = vadd.f32 0.0, %v747
    %v749 = vpop.f32.mrf.mxu0
    %750 = vmatprep.mubr.bf16.mxu0 0
    %751 = vmatmul.mubr.bf16.gmra.mxu0 %v199
    %v752 = vpop.f32.mrf.mxu0
    %v753 = vadd.f32 0.0, %v752
    %v754 = vpop.f32.mrf.mxu0
    %v755 = vpop.f32.mrf.mxu0
    %v756 = vadd.f32 0.0, %v755
    %v757 = vpop.f32.mrf.mxu0
    %758 = vmatprep.mubr.bf16.mxu0 0
    %759 = vmatmul.mubr.bf16.gmra.mxu0 %v202
    %v760 = vpop.f32.mrf.mxu0
    %v761 = vadd.f32 0.0, %v760
    %v762 = vpop.f32.mrf.mxu0
    %v763 = vpop.f32.mrf.mxu0
    %v764 = vadd.f32 0.0, %v763
    %v765 = vpop.f32.mrf.mxu0
    %766 = vmatprep.mubr.bf16.mxu0 0
    %767 = vmatmul.mubr.bf16.gmra.mxu0 %v205
    %v768 = vpop.f32.mrf.mxu0
    %v769 = vadd.f32 0.0, %v768
    %v770 = vpop.f32.mrf.mxu0
    %v771 = vpop.f32.mrf.mxu0
    %v772 = vadd.f32 0.0, %v771
    %v773 = vpop.f32.mrf.mxu0
    %774 = vdwg.mxu0
    %v775 = vmul.f32 %v745, %v275
    %v776 = vmul.f32 %v748, %v280
    %v777 = vmul.f32 %v753, %v285
    %v778 = vmul.f32 %v756, %v290
    %v779 = vmul.f32 %v761, %v295
    %v780 = vmul.f32 %v764, %v300
    %v781 = vmul.f32 %v769, %v305
    %v782 = vmul.f32 %v772, %v310
    %v783 = vpack.c.bf16 %v776, %v775
    %v784 = vpack.c.bf16 %v778, %v777
    %v785 = vpack.c.bf16 %v780, %v779
    %v786 = vpack.c.bf16 %v782, %v781
    %v787 = vld [vmem:[#allocation10] sm:$0xff]
    %v788 = vld [vmem:[#allocation10 + $0x8] sm:$0xff]
    %v789 = vld [vmem:[#allocation10 + $0x10] sm:$0xff]
    %v790 = vld [vmem:[#allocation10 + $0x18] sm:$0xff]
    %v791 = vld [vmem:[#allocation10 + $0x20] sm:$0xff]
    %v792 = vld [vmem:[#allocation10 + $0x28] sm:$0xff]
    %v793 = vld [vmem:[#allocation10 + $0x30] sm:$0xff]
    %v794 = vld [vmem:[#allocation10 + $0x38] sm:$0xff]
    %v795 = vld [vmem:[#allocation10 + $0x40] sm:$0xff]
    %v796 = vld [vmem:[#allocation10 + $0x48] sm:$0xff]
    %v797 = vld [vmem:[#allocation10 + $0x50] sm:$0xff]
    %v798 = vld [vmem:[#allocation10 + $0x58] sm:$0xff]
    %v799 = vld [vmem:[#allocation10 + $0x60] sm:$0xff]
    %v800 = vld [vmem:[#allocation10 + $0x68] sm:$0xff]
    %v801 = vld [vmem:[#allocation10 + $0x70] sm:$0xff]
    %v802 = vld [vmem:[#allocation10 + $0x78] sm:$0xff]
    %v803 = vld [vmem:[#allocation11] sm:$0xff]
    %v804 = vld [vmem:[#allocation11 + $0x8] sm:$0xff]
    %v805 = vld [vmem:[#allocation11 + $0x10] sm:$0xff]
    %v806 = vld [vmem:[#allocation11 + $0x18] sm:$0xff]
    %v807 = vld [vmem:[#allocation11 + $0x20] sm:$0xff]
    %v808 = vld [vmem:[#allocation11 + $0x28] sm:$0xff]
    %v809 = vld [vmem:[#allocation11 + $0x30] sm:$0xff]
    %v810 = vld [vmem:[#allocation11 + $0x38] sm:$0xff]
    %v811 = vld [vmem:[#allocation11 + $0x40] sm:$0xff]
    %v812 = vld [vmem:[#allocation11 + $0x48] sm:$0xff]
    %v813 = vld [vmem:[#allocation11 + $0x50] sm:$0xff]
    %v814 = vld [vmem:[#allocation11 + $0x58] sm:$0xff]
    %v815 = vld [vmem:[#allocation11 + $0x60] sm:$0xff]
    %v816 = vld [vmem:[#allocation11 + $0x68] sm:$0xff]
    %v817 = vld [vmem:[#allocation11 + $0x70] sm:$0xff]
    %v818 = vld [vmem:[#allocation11 + $0x78] sm:$0xff]
    %v835 = vunpack.c.l.b16 %v803
    %v836 = vunpack.c.h.b16 %v803
    %v837 = vunpack.c.l.b16 %v804
    %v838 = vunpack.c.h.b16 %v804
    %v839 = vunpack.c.l.b16 %v805
    %v840 = vunpack.c.h.b16 %v805
    %v841 = vunpack.c.l.b16 %v806
    %v842 = vunpack.c.h.b16 %v806
    %v843 = vunpack.c.l.b16 %v807
    %v844 = vunpack.c.h.b16 %v807
    %v845 = vunpack.c.l.b16 %v808
    %v846 = vunpack.c.h.b16 %v808
    %v847 = vunpack.c.l.b16 %v809
    %v848 = vunpack.c.h.b16 %v809
    %v849 = vunpack.c.l.b16 %v810
    %v850 = vunpack.c.h.b16 %v810
    %v851 = vunpack.c.l.b16 %v811
    %v852 = vunpack.c.h.b16 %v811
    %v853 = vunpack.c.l.b16 %v812
    %v854 = vunpack.c.h.b16 %v812
    %v855 = vunpack.c.l.b16 %v813
    %v856 = vunpack.c.h.b16 %v813
    %v857 = vunpack.c.l.b16 %v814
    %v858 = vunpack.c.h.b16 %v814
    %v859 = vunpack.c.l.b16 %v815
    %v860 = vunpack.c.h.b16 %v815
    %v861 = vunpack.c.l.b16 %v816
    %v862 = vunpack.c.h.b16 %v816
    %v863 = vunpack.c.l.b16 %v817
    %v864 = vunpack.c.h.b16 %v817
    %v865 = vunpack.c.l.b16 %v818
    %v866 = vunpack.c.h.b16 %v818
    %v867 = vpack.c.b16 %v837, %v835
    %v868 = vpack.c.b16 %v838, %v836
    %v869 = vpack.c.b16 %v841, %v839
    %v870 = vpack.c.b16 %v842, %v840
    %v871 = vpack.c.b16 %v845, %v843
    %v872 = vpack.c.b16 %v846, %v844
    %v873 = vpack.c.b16 %v849, %v847
    %v874 = vpack.c.b16 %v850, %v848
    %v875 = vpack.c.b16 %v853, %v851
    %v876 = vpack.c.b16 %v854, %v852
    %v877 = vpack.c.b16 %v857, %v855
    %v878 = vpack.c.b16 %v858, %v856
    %v879 = vpack.c.b16 %v861, %v859
    %v880 = vpack.c.b16 %v862, %v860
    %v881 = vpack.c.b16 %v865, %v863
    %v882 = vpack.c.b16 %v866, %v864
    %899 = vmatprep.subr.bf16.mxu0 %v882
    %900 = vmatpush1.bf16.msra.mxu0 %v881
    %901 = vmatprep.subr.bf16.mxu0 %v880
    %902 = vmatpush1.bf16.msra.mxu0 %v879
    %903 = vmatprep.subr.bf16.mxu0 %v878
    %904 = vmatpush1.bf16.msra.mxu0 %v877
    %905 = vmatprep.subr.bf16.mxu0 %v876
    %906 = vmatpush1.bf16.msra.mxu0 %v875
    %907 = vmatprep.subr.bf16.mxu0 %v874
    %908 = vmatpush1.bf16.msra.mxu0 %v873
    %909 = vmatprep.subr.bf16.mxu0 %v872
    %910 = vmatpush1.bf16.msra.mxu0 %v871
    %911 = vmatprep.subr.bf16.mxu0 %v870
    %912 = vmatpush1.bf16.msra.mxu0 %v869
    %913 = vmatprep.subr.bf16.mxu0 %v868
    %914 = vmatpush1.bf16.msra.mxu0 %v867
    %915 = vmatprep.subr.bf16.mxu0 0
    %916 = vmatpush2.bf16.msra.mxu0 0
    %917 = vmatprep.subr.bf16.mxu0 0
    %918 = vmatpush2.bf16.msra.mxu0 0
    %919 = vmatprep.subr.bf16.mxu0 0
    %920 = vmatpush2.bf16.msra.mxu0 0
    %921 = vmatprep.subr.bf16.mxu0 0
    %922 = vmatpush2.bf16.msra.mxu0 0
    %923 = vmatprep.subr.bf16.mxu0 0
    %924 = vmatpush2.bf16.msra.mxu0 0
    %925 = vmatprep.subr.bf16.mxu0 0
    %926 = vmatpush2.bf16.msra.mxu0 0
    %927 = vmatprep.subr.bf16.mxu0 0
    %928 = vmatpush2.bf16.msra.mxu0 0
    %929 = vmatprep.subr.bf16.mxu0 0
    %930 = vmatpush2.bf16.msra.mxu0 0
    %931 = vmatprep.mubr.bf16.mxu0 0
    %932 = vmatmul.mubr.bf16.gmra.mxu0 %v706
    %v933 = vpop.f32.mrf.mxu0
    %v934 = vadd.f32 0.0, %v933
    %v935 = vpop.f32.mrf.mxu0
    %v936 = vadd.f32 0.0, %v935
    %v937 = vpop.f32.mrf.mxu0
    %v938 = vadd.f32 0.0, %v937
    %v939 = vpop.f32.mrf.mxu0
    %v940 = vadd.f32 0.0, %v939
    %941 = vmatprep.mubr.bf16.mxu0 0
    %942 = vmatmul.mubr.bf16.gmra.mxu0 %v707
    %v943 = vpop.f32.mrf.mxu0
    %v944 = vadd.f32 0.0, %v943
    %v945 = vpop.f32.mrf.mxu0
    %v946 = vadd.f32 0.0, %v945
    %v947 = vpop.f32.mrf.mxu0
    %v948 = vadd.f32 0.0, %v947
    %v949 = vpop.f32.mrf.mxu0
    %v950 = vadd.f32 0.0, %v949
    %951 = vmatprep.mubr.bf16.mxu0 0
    %952 = vmatmul.mubr.bf16.gmra.mxu0 %v708
    %v953 = vpop.f32.mrf.mxu0
    %v954 = vadd.f32 0.0, %v953
    %v955 = vpop.f32.mrf.mxu0
    %v956 = vadd.f32 0.0, %v955
    %v957 = vpop.f32.mrf.mxu0
    %v958 = vadd.f32 0.0, %v957
    %v959 = vpop.f32.mrf.mxu0
    %v960 = vadd.f32 0.0, %v959
    %961 = vmatprep.mubr.bf16.mxu0 0
    %962 = vmatmul.mubr.bf16.gmra.mxu0 %v709
    %v963 = vpop.f32.mrf.mxu0
    %v964 = vadd.f32 0.0, %v963
    %v965 = vpop.f32.mrf.mxu0
    %v966 = vadd.f32 0.0, %v965
    %v967 = vpop.f32.mrf.mxu0
    %v968 = vadd.f32 0.0, %v967
    %v969 = vpop.f32.mrf.mxu0
    %v970 = vadd.f32 0.0, %v969
    %971 = vdwg.mxu0
    %v988 = vunpack.c.l.b16 %v787
    %v989 = vunpack.c.h.b16 %v787
    %v990 = vunpack.c.l.b16 %v788
    %v991 = vunpack.c.h.b16 %v788
    %v992 = vunpack.c.l.b16 %v789
    %v993 = vunpack.c.h.b16 %v789
    %v994 = vunpack.c.l.b16 %v790
    %v995 = vunpack.c.h.b16 %v790
    %v996 = vunpack.c.l.b16 %v791
    %v997 = vunpack.c.h.b16 %v791
    %v998 = vunpack.c.l.b16 %v792
    %v999 = vunpack.c.h.b16 %v792
    %v1000 = vunpack.c.l.b16 %v793
    %v1001 = vunpack.c.h.b16 %v793
    %v1002 = vunpack.c.l.b16 %v794
    %v1003 = vunpack.c.h.b16 %v794
    %v1004 = vunpack.c.l.b16 %v795
    %v1005 = vunpack.c.h.b16 %v795
    %v1006 = vunpack.c.l.b16 %v796
    %v1007 = vunpack.c.h.b16 %v796
    %v1008 = vunpack.c.l.b16 %v797
    %v1009 = vunpack.c.h.b16 %v797
    %v1010 = vunpack.c.l.b16 %v798
    %v1011 = vunpack.c.h.b16 %v798
    %v1012 = vunpack.c.l.b16 %v799
    %v1013 = vunpack.c.h.b16 %v799
    %v1014 = vunpack.c.l.b16 %v800
    %v1015 = vunpack.c.h.b16 %v800
    %v1016 = vunpack.c.l.b16 %v801
    %v1017 = vunpack.c.h.b16 %v801
    %v1018 = vunpack.c.l.b16 %v802
    %v1019 = vunpack.c.h.b16 %v802
    %v1020 = vpack.c.b16 %v990, %v988
    %v1021 = vpack.c.b16 %v991, %v989
    %v1022 = vpack.c.b16 %v994, %v992
    %v1023 = vpack.c.b16 %v995, %v993
    %v1024 = vpack.c.b16 %v998, %v996
    %v1025 = vpack.c.b16 %v999, %v997
    %v1026 = vpack.c.b16 %v1002, %v1000
    %v1027 = vpack.c.b16 %v1003, %v1001
    %v1028 = vpack.c.b16 %v1006, %v1004
    %v1029 = vpack.c.b16 %v1007, %v1005
    %v1030 = vpack.c.b16 %v1010, %v1008
    %v1031 = vpack.c.b16 %v1011, %v1009
    %v1032 = vpack.c.b16 %v1014, %v1012
    %v1033 = vpack.c.b16 %v1015, %v1013
    %v1034 = vpack.c.b16 %v1018, %v1016
    %v1035 = vpack.c.b16 %v1019, %v1017
    %1052 = vmatprep.subr.bf16.mxu0 %v1035
    %1053 = vmatpush1.bf16.msra.mxu0 %v1034
    %1054 = vmatprep.subr.bf16.mxu0 %v1033
    %1055 = vmatpush1.bf16.msra.mxu0 %v1032
    %1056 = vmatprep.subr.bf16.mxu0 %v1031
    %1057 = vmatpush1.bf16.msra.mxu0 %v1030
    %1058 = vmatprep.subr.bf16.mxu0 %v1029
    %1059 = vmatpush1.bf16.msra.mxu0 %v1028
    %1060 = vmatprep.subr.bf16.mxu0 %v1027
    %1061 = vmatpush1.bf16.msra.mxu0 %v1026
    %1062 = vmatprep.subr.bf16.mxu0 %v1025
    %1063 = vmatpush1.bf16.msra.mxu0 %v1024
    %1064 = vmatprep.subr.bf16.mxu0 %v1023
    %1065 = vmatpush1.bf16.msra.mxu0 %v1022
    %1066 = vmatprep.subr.bf16.mxu0 %v1021
    %1067 = vmatpush1.bf16.msra.mxu0 %v1020
    %1068 = vmatprep.subr.bf16.mxu0 0
    %1069 = vmatpush2.bf16.msra.mxu0 0
    %1070 = vmatprep.subr.bf16.mxu0 0
    %1071 = vmatpush2.bf16.msra.mxu0 0
    %1072 = vmatprep.subr.bf16.mxu0 0
    %1073 = vmatpush2.bf16.msra.mxu0 0
    %1074 = vmatprep.subr.bf16.mxu0 0
    %1075 = vmatpush2.bf16.msra.mxu0 0
    %1076 = vmatprep.subr.bf16.mxu0 0
    %1077 = vmatpush2.bf16.msra.mxu0 0
    %1078 = vmatprep.subr.bf16.mxu0 0
    %1079 = vmatpush2.bf16.msra.mxu0 0
    %1080 = vmatprep.subr.bf16.mxu0 0
    %1081 = vmatpush2.bf16.msra.mxu0 0
    %1082 = vmatprep.subr.bf16.mxu0 0
    %1083 = vmatpush2.bf16.msra.mxu0 0
    %1084 = vmatprep.mubr.bf16.mxu0 0
    %1085 = vmatmul.mubr.bf16.gmra.mxu0 %v783
    %v1086 = vpop.f32.mrf.mxu0
    %v1087 = vadd.f32 %v934, %v1086
    %v1088 = vpop.f32.mrf.mxu0
    %v1089 = vadd.f32 %v936, %v1088
    %v1090 = vpop.f32.mrf.mxu0
    %v1091 = vadd.f32 %v938, %v1090
    %v1092 = vpop.f32.mrf.mxu0
    %v1093 = vadd.f32 %v940, %v1092
    %1094 = vmatprep.mubr.bf16.mxu0 0
    %1095 = vmatmul.mubr.bf16.gmra.mxu0 %v784
    %v1096 = vpop.f32.mrf.mxu0
    %v1097 = vadd.f32 %v944, %v1096
    %v1098 = vpop.f32.mrf.mxu0
    %v1099 = vadd.f32 %v946, %v1098
    %v1100 = vpop.f32.mrf.mxu0
    %v1101 = vadd.f32 %v948, %v1100
    %v1102 = vpop.f32.mrf.mxu0
    %v1103 = vadd.f32 %v950, %v1102
    %1104 = vmatprep.mubr.bf16.mxu0 0
    %1105 = vmatmul.mubr.bf16.gmra.mxu0 %v785
    %v1106 = vpop.f32.mrf.mxu0
    %v1107 = vadd.f32 %v954, %v1106
    %v1108 = vpop.f32.mrf.mxu0
    %v1109 = vadd.f32 %v956, %v1108
    %v1110 = vpop.f32.mrf.mxu0
    %v1111 = vadd.f32 %v958, %v1110
    %v1112 = vpop.f32.mrf.mxu0
    %v1113 = vadd.f32 %v960, %v1112
    %1114 = vmatprep.mubr.bf16.mxu0 0
    %1115 = vmatmul.mubr.bf16.gmra.mxu0 %v786
    %v1116 = vpop.f32.mrf.mxu0
    %v1117 = vadd.f32 %v964, %v1116
    %v1118 = vpop.f32.mrf.mxu0
    %v1119 = vadd.f32 %v966, %v1118
    %v1120 = vpop.f32.mrf.mxu0
    %v1121 = vadd.f32 %v968, %v1120
    %v1122 = vpop.f32.mrf.mxu0
    %v1123 = vadd.f32 %v970, %v1122
    %1124 = vdwg.mxu0
    %v1125 = vld [vmem:[#allocation13] sm:$0x3]
    %v1127 = vlaneseq
    %v1128 = vshrl.u32 %v1127, 7
    %v1129 = vsub.s32 0, %v1128
    %v1130 = vrot.slane %v1125, %v1129
    %v1131 = vlaneseq
    %v1132 = vshrl.u32 %v1131, 7
    %v1133 = vsub.s32 1, %v1132
    %v1134 = vrot.slane %v1125, %v1133
    %v1137 = vadd.f32 %v1087, %v1130
    %v1138 = vadd.f32 %v1089, %v1134
    %v1139 = vadd.f32 %v1091, %v1130
    %v1140 = vadd.f32 %v1093, %v1134
    %v1141 = vadd.f32 %v1097, %v1130
    %v1142 = vadd.f32 %v1099, %v1134
    %v1143 = vadd.f32 %v1101, %v1130
    %v1144 = vadd.f32 %v1103, %v1134
    %v1145 = vadd.f32 %v1107, %v1130
    %v1146 = vadd.f32 %v1109, %v1134
    %v1147 = vadd.f32 %v1111, %v1130
    %v1148 = vadd.f32 %v1113, %v1134
    %v1149 = vadd.f32 %v1117, %v1130
    %v1150 = vadd.f32 %v1119, %v1134
    %v1151 = vadd.f32 %v1121, %v1130
    %v1152 = vadd.f32 %v1123, %v1134
    %v1153 = vmax.f32 %v1137, 0.0
    %v1154 = vmax.f32 %v1139, 0.0
    %v1155 = vmax.f32 %v1141, 0.0
    %v1156 = vmax.f32 %v1143, 0.0
    %v1157 = vmax.f32 %v1145, 0.0
    %v1158 = vmax.f32 %v1147, 0.0
    %v1159 = vmax.f32 %v1149, 0.0
    %v1160 = vmax.f32 %v1151, 0.0
    %v1161 = vadd.f32 %v1153, %v1138
    %v1162 = vadd.f32 %v1154, %v1140
    %v1163 = vadd.f32 %v1155, %v1142
    %v1164 = vadd.f32 %v1156, %v1144
    %v1165 = vadd.f32 %v1157, %v1146
    %v1166 = vadd.f32 %v1158, %v1148
    %v1167 = vadd.f32 %v1159, %v1150
    %v1168 = vadd.f32 %v1160, %v1152
    %v1169 = vpack.c.bf16 %v1162, %v1161
    %v1170 = vpack.c.bf16 %v1164, %v1163
    %v1171 = vpack.c.bf16 %v1166, %v1165
    %v1172 = vpack.c.bf16 %v1168, %v1167
    %1173 = vmatprep.subr.bf16.mxu0 0
    %1174 = vmatpush1.bf16.msra.mxu0 0
    %1175 = vmatprep.subr.bf16.mxu0 0
    %1176 = vmatpush1.bf16.msra.mxu0 0
    %1177 = vmatprep.subr.bf16.mxu0 0
    %1178 = vmatpush1.bf16.msra.mxu0 0
    %1179 = vmatprep.subr.bf16.mxu0 0
    %1180 = vmatpush1.bf16.msra.mxu0 0
    %1181 = vmatprep.subr.bf16.mxu0 0
    %1182 = vmatpush1.bf16.msra.mxu0 %v1172
    %1183 = vmatprep.subr.bf16.mxu0 0
    %1184 = vmatpush1.bf16.msra.mxu0 %v1171
    %1185 = vmatprep.subr.bf16.mxu0 0
    %1186 = vmatpush1.bf16.msra.mxu0 %v1170
    %1187 = vmatprep.subr.bf16.mxu0 0
    %1188 = vmatpush1.bf16.msra.mxu0 %v1169
    %1189 = vmatprep.subr.bf16.mxu0 0
    %1190 = vmatpush2.bf16.msra.mxu0 0
    %1191 = vmatprep.subr.bf16.mxu0 0
    %1192 = vmatpush2.bf16.msra.mxu0 0
    %1193 = vmatprep.subr.bf16.mxu0 0
    %1194 = vmatpush2.bf16.msra.mxu0 0
    %1195 = vmatprep.subr.bf16.mxu0 0
    %1196 = vmatpush2.bf16.msra.mxu0 0
    %1197 = vmatprep.subr.bf16.mxu0 0
    %1198 = vmatpush2.bf16.msra.mxu0 0
    %1199 = vmatprep.subr.bf16.mxu0 0
    %1200 = vmatpush2.bf16.msra.mxu0 0
    %1201 = vmatprep.subr.bf16.mxu0 0
    %1202 = vmatpush2.bf16.msra.mxu0 0
    %1203 = vmatprep.subr.bf16.mxu0 0
    %1204 = vmatpush2.bf16.msra.mxu0 0
    %1205 = vmatprep.mubr.bf16.mxu0 0
    %1206 = vmatmul.mubr.bf16.gmra.mxu0 %v196
    %v1207 = vpop.f32.mrf.mxu0
    %v1208 = vadd.f32 0.0, %v1207
    %v1209 = vpop.f32.mrf.mxu0
    %v1210 = vpop.f32.mrf.mxu0
    %v1211 = vadd.f32 0.0, %v1210
    %v1212 = vpop.f32.mrf.mxu0
    %1213 = vmatprep.mubr.bf16.mxu0 0
    %1214 = vmatmul.mubr.bf16.gmra.mxu0 %v199
    %v1215 = vpop.f32.mrf.mxu0
    %v1216 = vadd.f32 0.0, %v1215
    %v1217 = vpop.f32.mrf.mxu0
    %v1218 = vpop.f32.mrf.mxu0
    %v1219 = vadd.f32 0.0, %v1218
    %v1220 = vpop.f32.mrf.mxu0
    %1221 = vmatprep.mubr.bf16.mxu0 0
    %1222 = vmatmul.mubr.bf16.gmra.mxu0 %v202
    %v1223 = vpop.f32.mrf.mxu0
    %v1224 = vadd.f32 0.0, %v1223
    %v1225 = vpop.f32.mrf.mxu0
    %v1226 = vpop.f32.mrf.mxu0
    %v1227 = vadd.f32 0.0, %v1226
    %v1228 = vpop.f32.mrf.mxu0
    %1229 = vmatprep.mubr.bf16.mxu0 0
    %1230 = vmatmul.mubr.bf16.gmra.mxu0 %v205
    %v1231 = vpop.f32.mrf.mxu0
    %v1232 = vadd.f32 0.0, %v1231
    %v1233 = vpop.f32.mrf.mxu0
    %v1234 = vpop.f32.mrf.mxu0
    %v1235 = vadd.f32 0.0, %v1234
    %v1236 = vpop.f32.mrf.mxu0
    %1237 = vdwg.mxu0
    %v1238 = vmul.f32 %v1208, %v275
    %v1239 = vmul.f32 %v1211, %v280
    %v1240 = vmul.f32 %v1216, %v285
    %v1241 = vmul.f32 %v1219, %v290
    %v1242 = vmul.f32 %v1224, %v295
    %v1243 = vmul.f32 %v1227, %v300
    %v1244 = vmul.f32 %v1232, %v305
    %v1245 = vmul.f32 %v1235, %v310
    %v1246 = vpack.c.bf16 %v1239, %v1238
    %v1247 = vpack.c.bf16 %v1241, %v1240
    %v1248 = vpack.c.bf16 %v1243, %v1242
    %v1249 = vpack.c.bf16 %v1245, %v1244
    %v1250 = vld [vmem:[%s9] sm:$0xf]
    %v1251 = vld [vmem:[%s9 + $0x4] sm:$0xf]
    %v1252 = vld [vmem:[%s9 + $0x8] sm:$0xf]
    %v1253 = vld [vmem:[%s9 + $0xc] sm:$0xf]
    %v1254 = vld [vmem:[%s9 + $0x10] sm:$0xf]
    %v1255 = vld [vmem:[%s9 + $0x14] sm:$0xf]
    %v1256 = vld [vmem:[%s9 + $0x18] sm:$0xf]
    %v1257 = vld [vmem:[%s9 + $0x1c] sm:$0xf]
    %v1258 = vld [vmem:[%s9 + $0x20] sm:$0xf]
    %v1259 = vld [vmem:[%s9 + $0x24] sm:$0xf]
    %v1260 = vld [vmem:[%s9 + $0x28] sm:$0xf]
    %v1261 = vld [vmem:[%s9 + $0x2c] sm:$0xf]
    %v1262 = vld [vmem:[%s9 + $0x30] sm:$0xf]
    %v1263 = vld [vmem:[%s9 + $0x34] sm:$0xf]
    %v1264 = vld [vmem:[%s9 + $0x38] sm:$0xf]
    %v1265 = vld [vmem:[%s9 + $0x3c] sm:$0xf]
    %v1266 = vld [vmem:[#allocation14] sm:$0xf]
    %v1267 = vld [vmem:[#allocation14 + $0x4] sm:$0xf]
    %v1268 = vld [vmem:[#allocation14 + $0x8] sm:$0xf]
    %v1269 = vld [vmem:[#allocation14 + $0xc] sm:$0xf]
    %v1270 = vld [vmem:[#allocation14 + $0x10] sm:$0xf]
    %v1271 = vld [vmem:[#allocation14 + $0x14] sm:$0xf]
    %v1272 = vld [vmem:[#allocation14 + $0x18] sm:$0xf]
    %v1273 = vld [vmem:[#allocation14 + $0x1c] sm:$0xf]
    %v1274 = vld [vmem:[#allocation14 + $0x20] sm:$0xf]
    %v1275 = vld [vmem:[#allocation14 + $0x24] sm:$0xf]
    %v1276 = vld [vmem:[#allocation14 + $0x28] sm:$0xf]
    %v1277 = vld [vmem:[#allocation14 + $0x2c] sm:$0xf]
    %v1278 = vld [vmem:[#allocation14 + $0x30] sm:$0xf]
    %v1279 = vld [vmem:[#allocation14 + $0x34] sm:$0xf]
    %v1280 = vld [vmem:[#allocation14 + $0x38] sm:$0xf]
    %v1281 = vld [vmem:[#allocation14 + $0x3c] sm:$0xf]
    %v1298 = vunpack.c.l.b16 %v1266
    %v1299 = vunpack.c.l.b16 %v1267
    %v1300 = vunpack.c.l.b16 %v1268
    %v1301 = vunpack.c.l.b16 %v1269
    %v1302 = vunpack.c.l.b16 %v1270
    %v1303 = vunpack.c.l.b16 %v1271
    %v1304 = vunpack.c.l.b16 %v1272
    %v1305 = vunpack.c.l.b16 %v1273
    %v1306 = vunpack.c.l.b16 %v1274
    %v1307 = vunpack.c.l.b16 %v1275
    %v1308 = vunpack.c.l.b16 %v1276
    %v1309 = vunpack.c.l.b16 %v1277
    %v1310 = vunpack.c.l.b16 %v1278
    %v1311 = vunpack.c.l.b16 %v1279
    %v1312 = vunpack.c.l.b16 %v1280
    %v1313 = vunpack.c.l.b16 %v1281
    %v1314 = vpack.c.b16 %v1299, %v1298
    %v1315 = vpack.c.b16 %v1301, %v1300
    %v1316 = vpack.c.b16 %v1303, %v1302
    %v1317 = vpack.c.b16 %v1305, %v1304
    %v1318 = vpack.c.b16 %v1307, %v1306
    %v1319 = vpack.c.b16 %v1309, %v1308
    %v1320 = vpack.c.b16 %v1311, %v1310
    %v1321 = vpack.c.b16 %v1313, %v1312
    %1330 = vmatprep.subr.bf16.mxu0 0
    %1331 = vmatpush1.bf16.msra.mxu0 %v1321
    %1332 = vmatprep.subr.bf16.mxu0 0
    %1333 = vmatpush1.bf16.msra.mxu0 %v1320
    %1334 = vmatprep.subr.bf16.mxu0 0
    %1335 = vmatpush1.bf16.msra.mxu0 %v1319
    %1336 = vmatprep.subr.bf16.mxu0 0
    %1337 = vmatpush1.bf16.msra.mxu0 %v1318
    %1338 = vmatprep.subr.bf16.mxu0 0
    %1339 = vmatpush1.bf16.msra.mxu0 %v1317
    %1340 = vmatprep.subr.bf16.mxu0 0
    %1341 = vmatpush1.bf16.msra.mxu0 %v1316
    %1342 = vmatprep.subr.bf16.mxu0 0
    %1343 = vmatpush1.bf16.msra.mxu0 %v1315
    %1344 = vmatprep.subr.bf16.mxu0 0
    %1345 = vmatpush1.bf16.msra.mxu0 %v1314
    %1346 = vmatprep.subr.bf16.mxu0 0
    %1347 = vmatpush2.bf16.msra.mxu0 0
    %1348 = vmatprep.subr.bf16.mxu0 0
    %1349 = vmatpush2.bf16.msra.mxu0 0
    %1350 = vmatprep.subr.bf16.mxu0 0
    %1351 = vmatpush2.bf16.msra.mxu0 0
    %1352 = vmatprep.subr.bf16.mxu0 0
    %1353 = vmatpush2.bf16.msra.mxu0 0
    %1354 = vmatprep.subr.bf16.mxu0 0
    %1355 = vmatpush2.bf16.msra.mxu0 0
    %1356 = vmatprep.subr.bf16.mxu0 0
    %1357 = vmatpush2.bf16.msra.mxu0 0
    %1358 = vmatprep.subr.bf16.mxu0 0
    %1359 = vmatpush2.bf16.msra.mxu0 0
    %1360 = vmatprep.subr.bf16.mxu0 0
    %1361 = vmatpush2.bf16.msra.mxu0 0
    %1362 = vmatprep.mubr.bf16.mxu0 0
    %1363 = vmatmul.mubr.bf16.gmra.mxu0 %v1169
    %v1364 = vpop.f32.mrf.mxu0
    %v1365 = vadd.f32 0.0, %v1364
    %v1366 = vpop.f32.mrf.mxu0
    %v1367 = vpop.f32.mrf.mxu0
    %v1368 = vadd.f32 0.0, %v1367
    %v1369 = vpop.f32.mrf.mxu0
    %1370 = vmatprep.mubr.bf16.mxu0 0
    %1371 = vmatmul.mubr.bf16.gmra.mxu0 %v1170
    %v1372 = vpop.f32.mrf.mxu0
    %v1373 = vadd.f32 0.0, %v1372
    %v1374 = vpop.f32.mrf.mxu0
    %v1375 = vpop.f32.mrf.mxu0
    %v1376 = vadd.f32 0.0, %v1375
    %v1377 = vpop.f32.mrf.mxu0
    %1378 = vmatprep.mubr.bf16.mxu0 0
    %1379 = vmatmul.mubr.bf16.gmra.mxu0 %v1171
    %v1380 = vpop.f32.mrf.mxu0
    %v1381 = vadd.f32 0.0, %v1380
    %v1382 = vpop.f32.mrf.mxu0
    %v1383 = vpop.f32.mrf.mxu0
    %v1384 = vadd.f32 0.0, %v1383
    %v1385 = vpop.f32.mrf.mxu0
    %1386 = vmatprep.mubr.bf16.mxu0 0
    %1387 = vmatmul.mubr.bf16.gmra.mxu0 %v1172
    %v1388 = vpop.f32.mrf.mxu0
    %v1389 = vadd.f32 0.0, %v1388
    %v1390 = vpop.f32.mrf.mxu0
    %v1391 = vpop.f32.mrf.mxu0
    %v1392 = vadd.f32 0.0, %v1391
    %v1393 = vpop.f32.mrf.mxu0
    %1394 = vdwg.mxu0
    %v1411 = vunpack.c.l.b16 %v1250
    %v1412 = vunpack.c.l.b16 %v1251
    %v1413 = vunpack.c.l.b16 %v1252
    %v1414 = vunpack.c.l.b16 %v1253
    %v1415 = vunpack.c.l.b16 %v1254
    %v1416 = vunpack.c.l.b16 %v1255
    %v1417 = vunpack.c.l.b16 %v1256
    %v1418 = vunpack.c.l.b16 %v1257
    %v1419 = vunpack.c.l.b16 %v1258
    %v1420 = vunpack.c.l.b16 %v1259
    %v1421 = vunpack.c.l.b16 %v1260
    %v1422 = vunpack.c.l.b16 %v1261
    %v1423 = vunpack.c.l.b16 %v1262
    %v1424 = vunpack.c.l.b16 %v1263
    %v1425 = vunpack.c.l.b16 %v1264
    %v1426 = vunpack.c.l.b16 %v1265
    %v1427 = vpack.c.b16 %v1412, %v1411
    %v1428 = vpack.c.b16 %v1414, %v1413
    %v1429 = vpack.c.b16 %v1416, %v1415
    %v1430 = vpack.c.b16 %v1418, %v1417
    %v1431 = vpack.c.b16 %v1420, %v1419
    %v1432 = vpack.c.b16 %v1422, %v1421
    %v1433 = vpack.c.b16 %v1424, %v1423
    %v1434 = vpack.c.b16 %v1426, %v1425
    %1443 = vmatprep.subr.bf16.mxu0 0
    %1444 = vmatpush1.bf16.msra.mxu0 %v1434
    %1445 = vmatprep.subr.bf16.mxu0 0
    %1446 = vmatpush1.bf16.msra.mxu0 %v1433
    %1447 = vmatprep.subr.bf16.mxu0 0
    %1448 = vmatpush1.bf16.msra.mxu0 %v1432
    %1449 = vmatprep.subr.bf16.mxu0 0
    %1450 = vmatpush1.bf16.msra.mxu0 %v1431
    %1451 = vmatprep.subr.bf16.mxu0 0
    %1452 = vmatpush1.bf16.msra.mxu0 %v1430
    %1453 = vmatprep.subr.bf16.mxu0 0
    %1454 = vmatpush1.bf16.msra.mxu0 %v1429
    %1455 = vmatprep.subr.bf16.mxu0 0
    %1456 = vmatpush1.bf16.msra.mxu0 %v1428
    %1457 = vmatprep.subr.bf16.mxu0 0
    %1458 = vmatpush1.bf16.msra.mxu0 %v1427
    %1459 = vmatprep.subr.bf16.mxu0 0
    %1460 = vmatpush2.bf16.msra.mxu0 0
    %1461 = vmatprep.subr.bf16.mxu0 0
    %1462 = vmatpush2.bf16.msra.mxu0 0
    %1463 = vmatprep.subr.bf16.mxu0 0
    %1464 = vmatpush2.bf16.msra.mxu0 0
    %1465 = vmatprep.subr.bf16.mxu0 0
    %1466 = vmatpush2.bf16.msra.mxu0 0
    %1467 = vmatprep.subr.bf16.mxu0 0
    %1468 = vmatpush2.bf16.msra.mxu0 0
    %1469 = vmatprep.subr.bf16.mxu0 0
    %1470 = vmatpush2.bf16.msra.mxu0 0
    %1471 = vmatprep.subr.bf16.mxu0 0
    %1472 = vmatpush2.bf16.msra.mxu0 0
    %1473 = vmatprep.subr.bf16.mxu0 0
    %1474 = vmatpush2.bf16.msra.mxu0 0
    %1475 = vmatprep.mubr.bf16.mxu0 0
    %1476 = vmatmul.mubr.bf16.gmra.mxu0 %v1246
    %v1477 = vpop.f32.mrf.mxu0
    %v1478 = vadd.f32 %v1365, %v1477
    %v1479 = vpop.f32.mrf.mxu0
    %v1480 = vpop.f32.mrf.mxu0
    %v1481 = vadd.f32 %v1368, %v1480
    %v1482 = vpop.f32.mrf.mxu0
    %1483 = vmatprep.mubr.bf16.mxu0 0
    %1484 = vmatmul.mubr.bf16.gmra.mxu0 %v1247
    %v1485 = vpop.f32.mrf.mxu0
    %v1486 = vadd.f32 %v1373, %v1485
    %v1487 = vpop.f32.mrf.mxu0
    %v1488 = vpop.f32.mrf.mxu0
    %v1489 = vadd.f32 %v1376, %v1488
    %v1490 = vpop.f32.mrf.mxu0
    %1491 = vmatprep.mubr.bf16.mxu0 0
    %1492 = vmatmul.mubr.bf16.gmra.mxu0 %v1248
    %v1493 = vpop.f32.mrf.mxu0
    %v1494 = vadd.f32 %v1381, %v1493
    %v1495 = vpop.f32.mrf.mxu0
    %v1496 = vpop.f32.mrf.mxu0
    %v1497 = vadd.f32 %v1384, %v1496
    %v1498 = vpop.f32.mrf.mxu0
    %1499 = vmatprep.mubr.bf16.mxu0 0
    %1500 = vmatmul.mubr.bf16.gmra.mxu0 %v1249
    %v1501 = vpop.f32.mrf.mxu0
    %v1502 = vadd.f32 %v1389, %v1501
    %v1503 = vpop.f32.mrf.mxu0
    %v1504 = vpop.f32.mrf.mxu0
    %v1505 = vadd.f32 %v1392, %v1504
    %v1506 = vpop.f32.mrf.mxu0
    %1507 = vdwg.mxu0
    %v1508 = vld [vmem:[%s11] sm:$0x1]
    %v1510 = vlaneseq
    %v1511 = vshrl.u32 %v1510, 7
    %v1512 = vsub.s32 0, %v1511
    %v1513 = vrot.slane %v1508, %v1512
    %v1515 = vadd.f32 %v1478, %v1513
    %v1516 = vadd.f32 %v1481, %v1513
    %v1517 = vadd.f32 %v1486, %v1513
    %v1518 = vadd.f32 %v1489, %v1513
    %v1519 = vadd.f32 %v1494, %v1513
    %v1520 = vadd.f32 %v1497, %v1513
    %v1521 = vadd.f32 %v1502, %v1513
    %v1522 = vadd.f32 %v1505, %v1513
    %v1523 = vlaneseq
    %v1524 = vand.u32 %v1523, 127
    %vm1525 = vcmp.lt.s32.totalorder %v1524, 2
    %v1526 = vsel %vm1525, %v1515, -1e+30
    %v1527 = vsel %vm1525, %v1516, -1e+30
    %v1528 = vsel %vm1525, %v1517, -1e+30
    %v1529 = vsel %vm1525, %v1518, -1e+30
    %v1530 = vsel %vm1525, %v1519, -1e+30
    %v1531 = vsel %vm1525, %v1520, -1e+30
    %v1532 = vsel %vm1525, %v1521, -1e+30
    %v1533 = vsel %vm1525, %v1522, -1e+30
    %1534 = vmax.xlane.f32.xlu0 %v1526
    %v1535 = vpop.xlane.xlu0 %1534
    %1536 = vmax.xlane.f32.xlu0 %v1527
    %v1537 = vpop.xlane.xlu0 %1536
    %1538 = vmax.xlane.f32.xlu0 %v1528
    %v1539 = vpop.xlane.xlu0 %1538
    %1540 = vmax.xlane.f32.xlu0 %v1529
    %v1541 = vpop.xlane.xlu0 %1540
    %1542 = vmax.xlane.f32.xlu0 %v1530
    %v1543 = vpop.xlane.xlu0 %1542
    %1544 = vmax.xlane.f32.xlu0 %v1531
    %v1545 = vpop.xlane.xlu0 %1544
    %1546 = vmax.xlane.f32.xlu0 %v1532
    %v1547 = vpop.xlane.xlu0 %1546
    %1548 = vmax.xlane.f32.xlu0 %v1533
    %v1549 = vpop.xlane.xlu0 %1548
    %v1550 = vsub.f32 %v1526, %v1535
    %v1551 = vsub.f32 %v1527, %v1537
    %v1552 = vsub.f32 %v1528, %v1539
    %v1553 = vsub.f32 %v1529, %v1541
    %v1554 = vsub.f32 %v1530, %v1543
    %v1555 = vsub.f32 %v1531, %v1545
    %v1556 = vsub.f32 %v1532, %v1547
    %v1557 = vsub.f32 %v1533, %v1549
    %v1558 = vmul.f32 %v1550, 1.442695
    %v1559 = vpow.pop %v1558
    %v1560 = vmul.f32 %v1551, 1.442695
    %v1561 = vpow.pop %v1560
    %v1562 = vmul.f32 %v1552, 1.442695
    %v1563 = vpow.pop %v1562
    %v1564 = vmul.f32 %v1553, 1.442695
    %v1565 = vpow.pop %v1564
    %v1566 = vmul.f32 %v1554, 1.442695
    %v1567 = vpow.pop %v1566
    %v1568 = vmul.f32 %v1555, 1.442695
    %v1569 = vpow.pop %v1568
    %v1570 = vmul.f32 %v1556, 1.442695
    %v1571 = vpow.pop %v1570
    %v1572 = vmul.f32 %v1557, 1.442695
    %v1573 = vpow.pop %v1572
    %1574 = vadd.xlane.f32.xlu0 %v1559
    %v1575 = vpop.xlane.xlu0 %1574
    %1576 = vadd.xlane.f32.xlu0 %v1561
    %v1577 = vpop.xlane.xlu0 %1576
    %1578 = vadd.xlane.f32.xlu0 %v1563
    %v1579 = vpop.xlane.xlu0 %1578
    %1580 = vadd.xlane.f32.xlu0 %v1565
    %v1581 = vpop.xlane.xlu0 %1580
    %1582 = vadd.xlane.f32.xlu0 %v1567
    %v1583 = vpop.xlane.xlu0 %1582
    %1584 = vadd.xlane.f32.xlu0 %v1569
    %v1585 = vpop.xlane.xlu0 %1584
    %1586 = vadd.xlane.f32.xlu0 %v1571
    %v1587 = vpop.xlane.xlu0 %1586
    %1588 = vadd.xlane.f32.xlu0 %v1573
    %v1589 = vpop.xlane.xlu0 %1588
    %v1590 = vlog2.pop %v1575
    %v1591 = vmul.f32 %v1590, 0.6931472
    %v1592 = vlog2.pop %v1577
    %v1593 = vmul.f32 %v1592, 0.6931472
    %v1594 = vlog2.pop %v1579
    %v1595 = vmul.f32 %v1594, 0.6931472
    %v1596 = vlog2.pop %v1581
    %v1597 = vmul.f32 %v1596, 0.6931472
    %v1598 = vlog2.pop %v1583
    %v1599 = vmul.f32 %v1598, 0.6931472
    %v1600 = vlog2.pop %v1585
    %v1601 = vmul.f32 %v1600, 0.6931472
    %v1602 = vlog2.pop %v1587
    %v1603 = vmul.f32 %v1602, 0.6931472
    %v1604 = vlog2.pop %v1589
    %v1605 = vmul.f32 %v1604, 0.6931472
    %v1606 = vsub.f32 %v1550, %v1591
    %v1607 = vsub.f32 %v1551, %v1593
    %v1608 = vsub.f32 %v1552, %v1595
    %v1609 = vsub.f32 %v1553, %v1597
    %v1610 = vsub.f32 %v1554, %v1599
    %v1611 = vsub.f32 %v1555, %v1601
    %v1612 = vsub.f32 %v1556, %v1603
    %v1613 = vsub.f32 %v1557, %v1605
    %1614 = vst [vmem:[#allocation16] sm:$0xff] %v1606
    %1615 = vst [vmem:[#allocation16 + $0x8] sm:$0xff] %v1607
    %1616 = vst [vmem:[#allocation16 + $0x10] sm:$0xff] %v1608
    %1617 = vst [vmem:[#allocation16 + $0x18] sm:$0xff] %v1609
    %1618 = vst [vmem:[#allocation16 + $0x20] sm:$0xff] %v1610
    %1619 = vst [vmem:[#allocation16 + $0x28] sm:$0xff] %v1611
    %1620 = vst [vmem:[#allocation16 + $0x30] sm:$0xff] %v1612
    %1621 = vst [vmem:[#allocation16 + $0x38] sm:$0xff] %v1613
    // Predicated region
    $region82: #{tpu_custom_call.1} parent=1 // pred_check
      _
    $region83: #{tpu_custom_call.1} parent=1 // pred_check_branch
      %1623 = sbr.rel (0) target = $region85
    $region84: #{tpu_custom_call.1} parent=1 // pred_region
      %s1625 = ssub.s32 1024, 1024
      %1626 = vsyncadd [#allocation4], %s1625
      %s1627 = sshll.u32 [#allocation16], 4
      %s1628 = int_to_ptr.vmem [resolvable:$true] %s1627
      %1633 = dma.vmem_to_hbm [thread:$0]  %s1628, 1024, %s12, [#allocation4], 128, 128, 8
    $region85: #{tpu_custom_call.1} parent=1 // pred_fallthru
      _
    // Predicated region
    $region86: #{tpu_custom_call.1} parent=1 // pred_check
      _
    $region87: #{tpu_custom_call.1} parent=1 // pred_check_branch
      %1635 = sbr.rel (0) target = $region89
    $region88: #{tpu_custom_call.1} parent=1 // pred_region
      %1636 = dma.done [#allocation4], 1024
    $region89: #{tpu_custom_call.1} parent=1 // pred_fallthru
      _
    %1637 = vsyncpa [#allocation3], 1
    %1638 = vsyncpa [#allocation6], 1
    %1639 = vsyncpa [#allocation9], 1
    %1640 = vsyncpa [#allocation12], 1
    %1641 = vsyncpa [#allocation15], 1
    %1642 = vsyncpa [#allocation4], 1

</llo_original>
